<compile_context>
chip_gen: v7x
topology: tpu7x:2x2x1
jax: 0.10.0
libtpu: 0.0.40
codegen_flags: <defaults>
</compile_context>

<pallas_src>
import functools

import jax
import jax.numpy as jnp
from jax import lax
from jax.experimental import pallas as pl
from jax.experimental.pallas import tpu as pltpu

# ----------------------------- model config ---------------------------------
B = 2            # batch
S = 8            # sequence length
H = 32           # hidden size
NH = 4           # attention heads
DH = H // NH     # head dim
I = 64           # intermediate (FFN) size
L = 2            # number of encoder layers
VOCAB = 100
MAX_POS = 16
TYPE_VOCAB = 2
EPS = 1e-12      # BERT LayerNorm eps
M = B * S        # merged (batch*seq) rows
NEG_INF = -1e9
SCALE = 1.0 / (DH ** 0.5)

_LAYER_PARAM_ORDER = ("wq", "bq", "wk", "bk", "wv", "bv", "wo", "bo",
                      "ln1_g", "ln1_b", "wi", "bi", "wo2", "bo2",
                      "ln2_g", "ln2_b")


# ------------------------------ kernel helpers -------------------------------
def _layernorm_f32(z, g, b, eps):
    mu = jnp.mean(z, axis=-1, keepdims=True)
    var = jnp.mean(jnp.square(z - mu), axis=-1, keepdims=True)
    return (z - mu) * lax.rsqrt(var + eps) * g + b


# --------------------- fused L-layer BERT encoder kernel ---------------------
def _bert_encoder_kernel(emb_ref, mask_ref, eg_ref, eb_ref,
                         wq_ref, bq_ref, wk_ref, bk_ref, wv_ref, bv_ref,
                         wo_ref, bo_ref, g1_ref, b1_ref,
                         wi_ref, bi_ref, wo2_ref, bo2_ref, g2_ref, b2_ref,
                         o_ref, h_ref, *, eps, scale):
    """One grid step = one encoder layer; hidden state carried in VMEM."""
    l = pl.program_id(0)

    @pl.when(l == 0)
    def _():
        # Embedding LayerNorm folded into the first grid step (no separate
        # pallas_call / HBM round-trip for a 2 KiB tensor).
        h_ref[...] = _layernorm_f32(emb_ref[...], eg_ref[...], eb_ref[...], eps)

    x = h_ref[...]                          # (M, H) f32 residual stream
    xb = x.astype(jnp.bfloat16)             # bf16 operands for the MXU
    mask = mask_ref[...]                    # (M, M) additive block-diag + pad

    # --- Q/K/V projections (separate weights: every slice is lane-aligned) ---
    q = jnp.dot(xb, wq_ref[0], preferred_element_type=jnp.float32) + bq_ref[0]
    q = q * scale                           # fold 1/sqrt(DH) into q once
    k = jnp.dot(xb, wk_ref[0], preferred_element_type=jnp.float32) + bk_ref[0]
    v = jnp.dot(xb, wv_ref[0], preferred_element_type=jnp.float32) + bv_ref[0]

    # --- multi-head self attention over the merged (B*S) rows ----------------
    ctx_heads = []
    for hh in range(NH):                    # static unroll (NH = 4)
        sl = slice(hh * DH, (hh + 1) * DH)
        qh = q[:, sl].astype(jnp.bfloat16)
        kh = k[:, sl].astype(jnp.bfloat16)
        vh = v[:, sl].astype(jnp.bfloat16)
        # q @ k^T via dot_general contracting dims (no explicit transpose)
        s = lax.dot_general(qh, kh, (((1,), (1,)), ((), ())),
                            preferred_element_type=jnp.float32)
        s = s + mask
        s = s - jnp.max(s, axis=-1, keepdims=True)          # f32 stats
        p = jnp.exp(s)
        p = p / jnp.sum(p, axis=-1, keepdims=True)           # exact softmax
        ctx_heads.append(jnp.dot(p.astype(jnp.bfloat16), vh,
                                 preferred_element_type=jnp.float32))
    # contiguous ctx -> ONE (M,H)@(H,H) output projection
    ctx = jnp.concatenate(ctx_heads, axis=-1).astype(jnp.bfloat16)
    attn = jnp.dot(ctx, wo_ref[0],
                   preferred_element_type=jnp.float32) + bo_ref[0]

    # --- add & LayerNorm ------------------------------------------------------
    h1 = _layernorm_f32(attn + x, g1_ref[0], b1_ref[0], eps)

    # --- feed forward ---------------------------------------------------------
    inter = jnp.dot(h1.astype(jnp.bfloat16), wi_ref[0],
                    preferred_element_type=jnp.float32) + bi_ref[0]
    # TODO(synk): HF BERT default is exact (erf) GELU; tanh approximation is
    # used for robust Mosaic lowering (~1e-3 deviation from the reference).
    inter = jax.nn.gelu(inter, approximate=True)
    ffn = jnp.dot(inter.astype(jnp.bfloat16), wo2_ref[0],
                  preferred_element_type=jnp.float32) + bo2_ref[0]

    # --- add & LayerNorm, carry to next layer ---------------------------------
    h2 = _layernorm_f32(ffn + h1, g2_ref[0], b2_ref[0], eps)
    h_ref[...] = h2                         # stays resident in VMEM

    @pl.when(l == pl.num_programs(0) - 1)
    def _():
        o_ref[...] = h2


def _invariant_spec(x):
    n = x.ndim
    return pl.BlockSpec(x.shape, lambda l, _n=n: (0,) * _n)


def _per_layer_spec(x):
    n = x.ndim
    return pl.BlockSpec((1,) + x.shape[1:],
                        lambda l, _n=n: (l,) + (0,) * (_n - 1))


def bert_encoder(emb2d, add_mask, params):
    """emb2d: [B*S, H] f32; add_mask: [B*S, B*S] f32 additive mask."""
    inv_args = (emb2d, add_mask, params["emb_ln_g"], params["emb_ln_b"])
    layer_args = tuple(params["layers"][name] for name in _LAYER_PARAM_ORDER)

    return pl.pallas_call(
        functools.partial(_bert_encoder_kernel, eps=EPS, scale=SCALE),
        out_shape=jax.ShapeDtypeStruct((M, H), jnp.float32),
        grid_spec=pltpu.PrefetchScalarGridSpec(
            num_scalar_prefetch=0,
            grid=(L,),
            in_specs=[_invariant_spec(a) for a in inv_args]
                     + [_per_layer_spec(w) for w in layer_args],
            out_specs=pl.BlockSpec((M, H), lambda l: (0, 0)),
            scratch_shapes=[pltpu.VMEM((M, H), jnp.float32)]),
        compiler_params=pltpu.CompilerParams(
            # layer axis carries the hidden state -> sequential
            dimension_semantics=("arbitrary",)),
    )(*inv_args, *layer_args)


# ---------------------------- parameter init ---------------------------------
def init_params(key):
    def nrm(k, shape, scale=0.02):
        return (scale * jax.random.normal(k, shape)).astype(jnp.float32)

    keys = iter(jax.random.split(key, 16))
    p = {
        "word_emb": nrm(next(keys), (VOCAB, H)),
        "pos_emb": nrm(next(keys), (MAX_POS, H)),
        "type_emb": nrm(next(keys), (TYPE_VOCAB, H)),
        "emb_ln_g": jnp.ones((1, H), jnp.float32),
        "emb_ln_b": jnp.zeros((1, H), jnp.float32),
    }
    # Per-layer parameters stacked along a leading L axis so the fused kernel
    # streams layer l's weights with index_map = lambda l: (l, 0, ...).
    # Weights in bf16 (MXU fast path / half the DMA); biases & LN params f32.
    p["layers"] = {
        "wq": nrm(next(keys), (L, H, H)).astype(jnp.bfloat16),
        "bq": jnp.zeros((L, 1, H), jnp.float32),
        "wk": nrm(next(keys), (L, H, H)).astype(jnp.bfloat16),
        "bk": jnp.zeros((L, 1, H), jnp.float32),
        "wv": nrm(next(keys), (L, H, H)).astype(jnp.bfloat16),
        "bv": jnp.zeros((L, 1, H), jnp.float32),
        "wo": nrm(next(keys), (L, H, H)).astype(jnp.bfloat16),
        "bo": jnp.zeros((L, 1, H), jnp.float32),
        "ln1_g": jnp.ones((L, 1, H), jnp.float32),
        "ln1_b": jnp.zeros((L, 1, H), jnp.float32),
        "wi": nrm(next(keys), (L, H, I)).astype(jnp.bfloat16),
        "bi": jnp.zeros((L, 1, I), jnp.float32),
        "wo2": nrm(next(keys), (L, I, H)).astype(jnp.bfloat16),
        "bo2": jnp.zeros((L, 1, H), jnp.float32),
        "ln2_g": jnp.ones((L, 1, H), jnp.float32),
        "ln2_b": jnp.zeros((L, 1, H), jnp.float32),
    }
    return p


# ------------------------------ forward pass ----------------------------------
@jax.jit
def bert_forward(params, input_ids, input_mask, segment_ids):
    """Returns last_hidden_state [B, S, H] (BertModel(...)[0])."""
    # --- embeddings (gathers = plain-JAX glue under the same jit) ---
    pos_ids = jnp.arange(S, dtype=jnp.int32)
    emb = (jnp.take(params["word_emb"], input_ids, axis=0)
           + jnp.take(params["pos_emb"], pos_ids, axis=0)[None, :, :]
           + jnp.take(params["type_emb"], segment_ids, axis=0))
    emb2d = emb.reshape(M, H).astype(jnp.float32)

    # Block-diagonal additive attention mask over the merged (B*S) rows:
    # query row i may only attend to key j of the SAME batch element, and only
    # if key j is not padding (equivalent to per-batch attention + key mask).
    batch_idx = jnp.repeat(jnp.arange(B, dtype=jnp.int32), S)
    same_batch = batch_idx[:, None] == batch_idx[None, :]
    key_valid = (input_mask.reshape(-1) > 0)[None, :]
    add_mask = jnp.where(same_batch & key_valid, 0.0, NEG_INF).astype(jnp.float32)

    h = bert_encoder(emb2d, add_mask, params)
    return h.reshape(B, S, H)


# ---------------------------------- main --------------------------------------
if __name__ == "__main__":
    key = jax.random.PRNGKey(0)
    k_param, k_ids, k_seg = jax.random.split(key, 3)

    # TODO(synk): the original module loads pretrained HF weights from disk;
    # here we use deterministic random init (no file/network access allowed).
    params = init_params(k_param)

    input_ids = jax.random.randint(k_ids, (B, S), 0, VOCAB, dtype=jnp.int32)
    # last two tokens of batch element 1 are padding
    input_mask = jnp.array([[1] * S, [1] * (S - 2) + [0, 0]], dtype=jnp.int32)
    segment_ids = jax.random.randint(k_seg, (B, S), 0, TYPE_VOCAB,
                                     dtype=jnp.int32)

    out = bert_forward(params, input_ids, input_mask, segment_ids)
    out = jax.block_until_ready(out)

    assert out.shape == (B, S, H) and out.dtype == jnp.float32
    assert bool(jnp.all(jnp.isfinite(out)))
    print("KERNEL_OK")
</pallas_src>

<mosaic_0001>
module attributes {stable_mosaic.version = 11 : i64} {
  func.func @_bert_encoder_kernel(%arg0: i32, %arg1: memref<16x32xf32, #tpu.memory_space<vmem>>, %arg2: memref<16x16xf32, #tpu.memory_space<vmem>>, %arg3: memref<1x32xf32, #tpu.memory_space<vmem>>, %arg4: memref<1x32xf32, #tpu.memory_space<vmem>>, %arg5: memref<1x32x32xbf16, #tpu.memory_space<vmem>>, %arg6: memref<1x1x32xf32, #tpu.memory_space<vmem>>, %arg7: memref<1x32x32xbf16, #tpu.memory_space<vmem>>, %arg8: memref<1x1x32xf32, #tpu.memory_space<vmem>>, %arg9: memref<1x32x32xbf16, #tpu.memory_space<vmem>>, %arg10: memref<1x1x32xf32, #tpu.memory_space<vmem>>, %arg11: memref<1x32x32xbf16, #tpu.memory_space<vmem>>, %arg12: memref<1x1x32xf32, #tpu.memory_space<vmem>>, %arg13: memref<1x1x32xf32, #tpu.memory_space<vmem>>, %arg14: memref<1x1x32xf32, #tpu.memory_space<vmem>>, %arg15: memref<1x32x64xbf16, #tpu.memory_space<vmem>>, %arg16: memref<1x1x64xf32, #tpu.memory_space<vmem>>, %arg17: memref<1x64x32xbf16, #tpu.memory_space<vmem>>, %arg18: memref<1x1x32xf32, #tpu.memory_space<vmem>>, %arg19: memref<1x1x32xf32, #tpu.memory_space<vmem>>, %arg20: memref<1x1x32xf32, #tpu.memory_space<vmem>>, %arg21: memref<16x32xf32, #tpu.memory_space<vmem>>, %arg22: memref<16x32xf32, #tpu.memory_space<vmem>>) attributes {dimension_semantics = [#tpu.dimension_semantics<arbitrary>], iteration_bounds = array<i64: 2>, scalar_prefetch = 0 : i64, scratch_operands = 1 : i64, tpu.core_type = #tpu.core_type<tc>, window_params = [{pipeline_mode = #tpu.pipeline_mode<synchronous>, transform_indices = @transform_0, window_bounds = array<i64: 16, 32>}, {pipeline_mode = #tpu.pipeline_mode<synchronous>, transform_indices = @transform_1, window_bounds = array<i64: 16, 16>}, {pipeline_mode = #tpu.pipeline_mode<synchronous>, transform_indices = @transform_2, window_bounds = array<i64: 1, 32>}, {pipeline_mode = #tpu.pipeline_mode<synchronous>, transform_indices = @transform_3, window_bounds = array<i64: 1, 32>}, {transform_indices = @transform_4, window_bounds = array<i64: 1, 32, 32>}, {transform_indices = @transform_5, window_bounds = array<i64: 1, 1, 32>}, {transform_indices = @transform_6, window_bounds = array<i64: 1, 32, 32>}, {transform_indices = @transform_7, window_bounds = array<i64: 1, 1, 32>}, {transform_indices = @transform_8, window_bounds = array<i64: 1, 32, 32>}, {transform_indices = @transform_9, window_bounds = array<i64: 1, 1, 32>}, {transform_indices = @transform_10, window_bounds = array<i64: 1, 32, 32>}, {transform_indices = @transform_11, window_bounds = array<i64: 1, 1, 32>}, {transform_indices = @transform_12, window_bounds = array<i64: 1, 1, 32>}, {transform_indices = @transform_13, window_bounds = array<i64: 1, 1, 32>}, {transform_indices = @transform_14, window_bounds = array<i64: 1, 32, 64>}, {transform_indices = @transform_15, window_bounds = array<i64: 1, 1, 64>}, {transform_indices = @transform_16, window_bounds = array<i64: 1, 64, 32>}, {transform_indices = @transform_17, window_bounds = array<i64: 1, 1, 32>}, {transform_indices = @transform_18, window_bounds = array<i64: 1, 1, 32>}, {transform_indices = @transform_19, window_bounds = array<i64: 1, 1, 32>}, {pipeline_mode = #tpu.pipeline_mode<synchronous>, transform_indices = @transform_20, window_bounds = array<i64: 16, 32>}]} {
    %c0_i32 = arith.constant 0 : i32
    %0 = arith.cmpi eq, %arg0, %c0_i32 : i32
    %1 = arith.extui %0 : i1 to i32
    %c0_i32_0 = arith.constant 0 : i32
    %2 = arith.cmpi ne, %1, %c0_i32_0 : i32
    scf.if %2 {
      %c0_91 = arith.constant 0 : index
      %c0_92 = arith.constant 0 : index
      %201 = vector.load %arg1[%c0_91, %c0_92] : memref<16x32xf32, #tpu.memory_space<vmem>>, vector<16x32xf32>
      %c0_93 = arith.constant 0 : index
      %c0_94 = arith.constant 0 : index
      %202 = vector.load %arg3[%c0_93, %c0_94] : memref<1x32xf32, #tpu.memory_space<vmem>>, vector<1x32xf32>
      %c0_95 = arith.constant 0 : index
      %c0_96 = arith.constant 0 : index
      %203 = vector.load %arg4[%c0_95, %c0_96] : memref<1x32xf32, #tpu.memory_space<vmem>>, vector<1x32xf32>
      %cst_97 = arith.constant dense<0.000000e+00> : vector<16xf32>
      %204 = vector.multi_reduction <add>, %201, %cst_97 [1] : vector<16x32xf32> to vector<16xf32>
      %205 = vector.shape_cast %204 : vector<16xf32> to vector<16x1xf32>
      %cst_98 = arith.constant 3.200000e+01 : f32
      %206 = vector.broadcast %cst_98 : f32 to vector<16x1xf32>
      %207 = arith.divf %205, %206 : vector<16x1xf32>
      %208 = vector.broadcast %207 : vector<16x1xf32> to vector<16x32xf32>
      %209 = arith.subf %201, %208 : vector<16x32xf32>
      %210 = arith.mulf %209, %209 : vector<16x32xf32>
      %cst_99 = arith.constant dense<0.000000e+00> : vector<16xf32>
      %211 = vector.multi_reduction <add>, %210, %cst_99 [1] : vector<16x32xf32> to vector<16xf32>
      %212 = vector.shape_cast %211 : vector<16xf32> to vector<16x1xf32>
      %cst_100 = arith.constant 3.200000e+01 : f32
      %213 = vector.broadcast %cst_100 : f32 to vector<16x1xf32>
      %214 = arith.divf %212, %213 : vector<16x1xf32>
      %215 = vector.broadcast %207 : vector<16x1xf32> to vector<16x32xf32>
      %216 = arith.subf %201, %215 : vector<16x32xf32>
      %cst_101 = arith.constant 9.99999996E-13 : f32
      %217 = vector.broadcast %cst_101 : f32 to vector<16x1xf32>
      %218 = arith.addf %214, %217 : vector<16x1xf32>
      %219 = math.rsqrt %218 : vector<16x1xf32>
      %220 = vector.broadcast %219 : vector<16x1xf32> to vector<16x32xf32>
      %221 = arith.mulf %216, %220 : vector<16x32xf32>
      %222 = vector.broadcast %202 : vector<1x32xf32> to vector<16x32xf32>
      %223 = arith.mulf %221, %222 : vector<16x32xf32>
      %224 = vector.broadcast %203 : vector<1x32xf32> to vector<16x32xf32>
      %225 = arith.addf %223, %224 : vector<16x32xf32>
      %c0_102 = arith.constant 0 : index
      %c0_103 = arith.constant 0 : index
      %226 = vector.load %arg22[%c0_102, %c0_103] : memref<16x32xf32, #tpu.memory_space<vmem>>, vector<16x32xf32>
      tpu.vector_store %arg22[%c0_102, %c0_103], %225 {strides = array<i32>} : memref<16x32xf32, #tpu.memory_space<vmem>>, vector<16x32xf32>,
    } else {
    }
    %c0 = arith.constant 0 : index
    %c0_1 = arith.constant 0 : index
    %3 = vector.load %arg22[%c0, %c0_1] : memref<16x32xf32, #tpu.memory_space<vmem>>, vector<16x32xf32>
    %4 = arith.truncf %3 : vector<16x32xf32> to vector<16x32xbf16>
    %c0_2 = arith.constant 0 : index
    %c0_3 = arith.constant 0 : index
    %5 = vector.load %arg2[%c0_2, %c0_3] : memref<16x16xf32, #tpu.memory_space<vmem>>, vector<16x16xf32>
    %c0_4 = arith.constant 0 : index
    %c0_5 = arith.constant 0 : index
    %c0_6 = arith.constant 0 : index
    %6 = vector.load %arg5[%c0_4, %c0_5, %c0_6] : memref<1x32x32xbf16, #tpu.memory_space<vmem>>, vector<1x32x32xbf16>
    %7 = vector.shape_cast %6 : vector<1x32x32xbf16> to vector<32x32xbf16>
    %cst = arith.constant dense<0.000000e+00> : vector<16x32xf32>
    %8 = tpu.matmul %4, %7, %cst {dimension_numbers = #tpu.dot_dimension_numbers<[1], [0], [0], [1], [0, 0, 1, 1], [], []>} : vector<16x32xbf16>, vector<32x32xbf16>, vector<16x32xf32> -> vector<16x32xf32>
    %c0_7 = arith.constant 0 : index
    %c0_8 = arith.constant 0 : index
    %c0_9 = arith.constant 0 : index
    %9 = vector.load %arg6[%c0_7, %c0_8, %c0_9] : memref<1x1x32xf32, #tpu.memory_space<vmem>>, vector<1x1x32xf32>
    %10 = vector.shape_cast %9 : vector<1x1x32xf32> to vector<1x32xf32>
    %11 = vector.broadcast %10 : vector<1x32xf32> to vector<16x32xf32>
    %12 = arith.addf %8, %11 : vector<16x32xf32>
    %cst_10 = arith.constant 0.353553385 : f32
    %13 = vector.broadcast %cst_10 : f32 to vector<16x32xf32>
    %14 = arith.mulf %12, %13 : vector<16x32xf32>
    %c0_11 = arith.constant 0 : index
    %c0_12 = arith.constant 0 : index
    %c0_13 = arith.constant 0 : index
    %15 = vector.load %arg7[%c0_11, %c0_12, %c0_13] : memref<1x32x32xbf16, #tpu.memory_space<vmem>>, vector<1x32x32xbf16>
    %16 = vector.shape_cast %15 : vector<1x32x32xbf16> to vector<32x32xbf16>
    %cst_14 = arith.constant dense<0.000000e+00> : vector<16x32xf32>
    %17 = tpu.matmul %4, %16, %cst_14 {dimension_numbers = #tpu.dot_dimension_numbers<[1], [0], [0], [1], [0, 0, 1, 1], [], []>} : vector<16x32xbf16>, vector<32x32xbf16>, vector<16x32xf32> -> vector<16x32xf32>
    %c0_15 = arith.constant 0 : index
    %c0_16 = arith.constant 0 : index
    %c0_17 = arith.constant 0 : index
    %18 = vector.load %arg8[%c0_15, %c0_16, %c0_17] : memref<1x1x32xf32, #tpu.memory_space<vmem>>, vector<1x1x32xf32>
    %19 = vector.shape_cast %18 : vector<1x1x32xf32> to vector<1x32xf32>
    %20 = vector.broadcast %19 : vector<1x32xf32> to vector<16x32xf32>
    %21 = arith.addf %17, %20 : vector<16x32xf32>
    %c0_18 = arith.constant 0 : index
    %c0_19 = arith.constant 0 : index
    %c0_20 = arith.constant 0 : index
    %22 = vector.load %arg9[%c0_18, %c0_19, %c0_20] : memref<1x32x32xbf16, #tpu.memory_space<vmem>>, vector<1x32x32xbf16>
    %23 = vector.shape_cast %22 : vector<1x32x32xbf16> to vector<32x32xbf16>
    %cst_21 = arith.constant dense<0.000000e+00> : vector<16x32xf32>
    %24 = tpu.matmul %4, %23, %cst_21 {dimension_numbers = #tpu.dot_dimension_numbers<[1], [0], [0], [1], [0, 0, 1, 1], [], []>} : vector<16x32xbf16>, vector<32x32xbf16>, vector<16x32xf32> -> vector<16x32xf32>
    %c0_22 = arith.constant 0 : index
    %c0_23 = arith.constant 0 : index
    %c0_24 = arith.constant 0 : index
    %25 = vector.load %arg10[%c0_22, %c0_23, %c0_24] : memref<1x1x32xf32, #tpu.memory_space<vmem>>, vector<1x1x32xf32>
    %26 = vector.shape_cast %25 : vector<1x1x32xf32> to vector<1x32xf32>
    %27 = vector.broadcast %26 : vector<1x32xf32> to vector<16x32xf32>
    %28 = arith.addf %24, %27 : vector<16x32xf32>
    %29 = vector.extract_strided_slice %14 {offsets = [0, 0], sizes = [16, 8], strides = [1, 1]} : vector<16x32xf32> to vector<16x8xf32>
    %30 = arith.truncf %29 : vector<16x8xf32> to vector<16x8xbf16>
    %31 = vector.extract_strided_slice %21 {offsets = [0, 0], sizes = [16, 8], strides = [1, 1]} : vector<16x32xf32> to vector<16x8xf32>
    %32 = arith.truncf %31 : vector<16x8xf32> to vector<16x8xbf16>
    %33 = vector.extract_strided_slice %28 {offsets = [0, 0], sizes = [16, 8], strides = [1, 1]} : vector<16x32xf32> to vector<16x8xf32>
    %34 = arith.truncf %33 : vector<16x8xf32> to vector<16x8xbf16>
    %cst_25 = arith.constant dense<0.000000e+00> : vector<16x16xf32>
    %35 = tpu.matmul %30, %32, %cst_25 {dimension_numbers = #tpu.dot_dimension_numbers<[1], [1], [0], [0], [0, 0, 1, 0], [], []>} : vector<16x8xbf16>, vector<16x8xbf16>, vector<16x16xf32> -> vector<16x16xf32>
    %36 = arith.addf %35, %5 : vector<16x16xf32>
    %cst_26 = arith.constant dense<0xFF800000> : vector<16xf32>
    %37 = vector.multi_reduction <maximumf>, %36, %cst_26 [1] : vector<16x16xf32> to vector<16xf32>
    %38 = vector.shape_cast %37 : vector<16xf32> to vector<16x1xf32>
    %39 = vector.broadcast %38 : vector<16x1xf32> to vector<16x16xf32>
    %40 = arith.subf %36, %39 : vector<16x16xf32>
    %41 = math.exp %40 : vector<16x16xf32>
    %cst_27 = arith.constant dense<0.000000e+00> : vector<16xf32>
    %42 = vector.multi_reduction <add>, %41, %cst_27 [1] : vector<16x16xf32> to vector<16xf32>
    %43 = vector.shape_cast %42 : vector<16xf32> to vector<16x1xf32>
    %44 = vector.broadcast %43 : vector<16x1xf32> to vector<16x16xf32>
    %45 = arith.divf %41, %44 : vector<16x16xf32>
    %46 = arith.truncf %45 : vector<16x16xf32> to vector<16x16xbf16>
    %cst_28 = arith.constant dense<0.000000e+00> : vector<16x8xf32>
    %47 = tpu.matmul %46, %34, %cst_28 {dimension_numbers = #tpu.dot_dimension_numbers<[1], [0], [0], [1], [0, 0, 1, 1], [], []>} : vector<16x16xbf16>, vector<16x8xbf16>, vector<16x8xf32> -> vector<16x8xf32>
    %48 = vector.extract_strided_slice %14 {offsets = [0, 8], sizes = [16, 8], strides = [1, 1]} : vector<16x32xf32> to vector<16x8xf32>
    %49 = arith.truncf %48 : vector<16x8xf32> to vector<16x8xbf16>
    %50 = vector.extract_strided_slice %21 {offsets = [0, 8], sizes = [16, 8], strides = [1, 1]} : vector<16x32xf32> to vector<16x8xf32>
    %51 = arith.truncf %50 : vector<16x8xf32> to vector<16x8xbf16>
    %52 = vector.extract_strided_slice %28 {offsets = [0, 8], sizes = [16, 8], strides = [1, 1]} : vector<16x32xf32> to vector<16x8xf32>
    %53 = arith.truncf %52 : vector<16x8xf32> to vector<16x8xbf16>
    %cst_29 = arith.constant dense<0.000000e+00> : vector<16x16xf32>
    %54 = tpu.matmul %49, %51, %cst_29 {dimension_numbers = #tpu.dot_dimension_numbers<[1], [1], [0], [0], [0, 0, 1, 0], [], []>} : vector<16x8xbf16>, vector<16x8xbf16>, vector<16x16xf32> -> vector<16x16xf32>
    %55 = arith.addf %54, %5 : vector<16x16xf32>
    %cst_30 = arith.constant dense<0xFF800000> : vector<16xf32>
    %56 = vector.multi_reduction <maximumf>, %55, %cst_30 [1] : vector<16x16xf32> to vector<16xf32>
    %57 = vector.shape_cast %56 : vector<16xf32> to vector<16x1xf32>
    %58 = vector.broadcast %57 : vector<16x1xf32> to vector<16x16xf32>
    %59 = arith.subf %55, %58 : vector<16x16xf32>
    %60 = math.exp %59 : vector<16x16xf32>
    %cst_31 = arith.constant dense<0.000000e+00> : vector<16xf32>
    %61 = vector.multi_reduction <add>, %60, %cst_31 [1] : vector<16x16xf32> to vector<16xf32>
    %62 = vector.shape_cast %61 : vector<16xf32> to vector<16x1xf32>
    %63 = vector.broadcast %62 : vector<16x1xf32> to vector<16x16xf32>
    %64 = arith.divf %60, %63 : vector<16x16xf32>
    %65 = arith.truncf %64 : vector<16x16xf32> to vector<16x16xbf16>
    %cst_32 = arith.constant dense<0.000000e+00> : vector<16x8xf32>
    %66 = tpu.matmul %65, %53, %cst_32 {dimension_numbers = #tpu.dot_dimension_numbers<[1], [0], [0], [1], [0, 0, 1, 1], [], []>} : vector<16x16xbf16>, vector<16x8xbf16>, vector<16x8xf32> -> vector<16x8xf32>
    %67 = vector.extract_strided_slice %14 {offsets = [0, 16], sizes = [16, 8], strides = [1, 1]} : vector<16x32xf32> to vector<16x8xf32>
    %68 = arith.truncf %67 : vector<16x8xf32> to vector<16x8xbf16>
    %69 = vector.extract_strided_slice %21 {offsets = [0, 16], sizes = [16, 8], strides = [1, 1]} : vector<16x32xf32> to vector<16x8xf32>
    %70 = arith.truncf %69 : vector<16x8xf32> to vector<16x8xbf16>
    %71 = vector.extract_strided_slice %28 {offsets = [0, 16], sizes = [16, 8], strides = [1, 1]} : vector<16x32xf32> to vector<16x8xf32>
    %72 = arith.truncf %71 : vector<16x8xf32> to vector<16x8xbf16>
    %cst_33 = arith.constant dense<0.000000e+00> : vector<16x16xf32>
    %73 = tpu.matmul %68, %70, %cst_33 {dimension_numbers = #tpu.dot_dimension_numbers<[1], [1], [0], [0], [0, 0, 1, 0], [], []>} : vector<16x8xbf16>, vector<16x8xbf16>, vector<16x16xf32> -> vector<16x16xf32>
    %74 = arith.addf %73, %5 : vector<16x16xf32>
    %cst_34 = arith.constant dense<0xFF800000> : vector<16xf32>
    %75 = vector.multi_reduction <maximumf>, %74, %cst_34 [1] : vector<16x16xf32> to vector<16xf32>
    %76 = vector.shape_cast %75 : vector<16xf32> to vector<16x1xf32>
    %77 = vector.broadcast %76 : vector<16x1xf32> to vector<16x16xf32>
    %78 = arith.subf %74, %77 : vector<16x16xf32>
    %79 = math.exp %78 : vector<16x16xf32>
    %cst_35 = arith.constant dense<0.000000e+00> : vector<16xf32>
    %80 = vector.multi_reduction <add>, %79, %cst_35 [1] : vector<16x16xf32> to vector<16xf32>
    %81 = vector.shape_cast %80 : vector<16xf32> to vector<16x1xf32>
    %82 = vector.broadcast %81 : vector<16x1xf32> to vector<16x16xf32>
    %83 = arith.divf %79, %82 : vector<16x16xf32>
    %84 = arith.truncf %83 : vector<16x16xf32> to vector<16x16xbf16>
    %cst_36 = arith.constant dense<0.000000e+00> : vector<16x8xf32>
    %85 = tpu.matmul %84, %72, %cst_36 {dimension_numbers = #tpu.dot_dimension_numbers<[1], [0], [0], [1], [0, 0, 1, 1], [], []>} : vector<16x16xbf16>, vector<16x8xbf16>, vector<16x8xf32> -> vector<16x8xf32>
    %86 = vector.extract_strided_slice %14 {offsets = [0, 24], sizes = [16, 8], strides = [1, 1]} : vector<16x32xf32> to vector<16x8xf32>
    %87 = arith.truncf %86 : vector<16x8xf32> to vector<16x8xbf16>
    %88 = vector.extract_strided_slice %21 {offsets = [0, 24], sizes = [16, 8], strides = [1, 1]} : vector<16x32xf32> to vector<16x8xf32>
    %89 = arith.truncf %88 : vector<16x8xf32> to vector<16x8xbf16>
    %90 = vector.extract_strided_slice %28 {offsets = [0, 24], sizes = [16, 8], strides = [1, 1]} : vector<16x32xf32> to vector<16x8xf32>
    %91 = arith.truncf %90 : vector<16x8xf32> to vector<16x8xbf16>
    %cst_37 = arith.constant dense<0.000000e+00> : vector<16x16xf32>
    %92 = tpu.matmul %87, %89, %cst_37 {dimension_numbers = #tpu.dot_dimension_numbers<[1], [1], [0], [0], [0, 0, 1, 0], [], []>} : vector<16x8xbf16>, vector<16x8xbf16>, vector<16x16xf32> -> vector<16x16xf32>
    %93 = arith.addf %92, %5 : vector<16x16xf32>
    %cst_38 = arith.constant dense<0xFF800000> : vector<16xf32>
    %94 = vector.multi_reduction <maximumf>, %93, %cst_38 [1] : vector<16x16xf32> to vector<16xf32>
    %95 = vector.shape_cast %94 : vector<16xf32> to vector<16x1xf32>
    %96 = vector.broadcast %95 : vector<16x1xf32> to vector<16x16xf32>
    %97 = arith.subf %93, %96 : vector<16x16xf32>
    %98 = math.exp %97 : vector<16x16xf32>
    %cst_39 = arith.constant dense<0.000000e+00> : vector<16xf32>
    %99 = vector.multi_reduction <add>, %98, %cst_39 [1] : vector<16x16xf32> to vector<16xf32>
    %100 = vector.shape_cast %99 : vector<16xf32> to vector<16x1xf32>
    %101 = vector.broadcast %100 : vector<16x1xf32> to vector<16x16xf32>
    %102 = arith.divf %98, %101 : vector<16x16xf32>
    %103 = arith.truncf %102 : vector<16x16xf32> to vector<16x16xbf16>
    %cst_40 = arith.constant dense<0.000000e+00> : vector<16x8xf32>
    %104 = tpu.matmul %103, %91, %cst_40 {dimension_numbers = #tpu.dot_dimension_numbers<[1], [0], [0], [1], [0, 0, 1, 1], [], []>} : vector<16x16xbf16>, vector<16x8xbf16>, vector<16x8xf32> -> vector<16x8xf32>
    %105 = tpu.concatenate %47, %66, %85, %104 in 1 : vector<16x8xf32>, vector<16x8xf32>, vector<16x8xf32>, vector<16x8xf32> -> vector<16x32xf32>
    %106 = arith.truncf %105 : vector<16x32xf32> to vector<16x32xbf16>
    %c0_41 = arith.constant 0 : index
    %c0_42 = arith.constant 0 : index
    %c0_43 = arith.constant 0 : index
    %107 = vector.load %arg11[%c0_41, %c0_42, %c0_43] : memref<1x32x32xbf16, #tpu.memory_space<vmem>>, vector<1x32x32xbf16>
    %108 = vector.shape_cast %107 : vector<1x32x32xbf16> to vector<32x32xbf16>
    %cst_44 = arith.constant dense<0.000000e+00> : vector<16x32xf32>
    %109 = tpu.matmul %106, %108, %cst_44 {dimension_numbers = #tpu.dot_dimension_numbers<[1], [0], [0], [1], [0, 0, 1, 1], [], []>} : vector<16x32xbf16>, vector<32x32xbf16>, vector<16x32xf32> -> vector<16x32xf32>
    %c0_45 = arith.constant 0 : index
    %c0_46 = arith.constant 0 : index
    %c0_47 = arith.constant 0 : index
    %110 = vector.load %arg12[%c0_45, %c0_46, %c0_47] : memref<1x1x32xf32, #tpu.memory_space<vmem>>, vector<1x1x32xf32>
    %111 = vector.shape_cast %110 : vector<1x1x32xf32> to vector<1x32xf32>
    %112 = vector.broadcast %111 : vector<1x32xf32> to vector<16x32xf32>
    %113 = arith.addf %109, %112 : vector<16x32xf32>
    %114 = arith.addf %113, %3 : vector<16x32xf32>
    %c0_48 = arith.constant 0 : index
    %c0_49 = arith.constant 0 : index
    %c0_50 = arith.constant 0 : index
    %115 = vector.load %arg13[%c0_48, %c0_49, %c0_50] : memref<1x1x32xf32, #tpu.memory_space<vmem>>, vector<1x1x32xf32>
    %116 = vector.shape_cast %115 : vector<1x1x32xf32> to vector<1x32xf32>
    %c0_51 = arith.constant 0 : index
    %c0_52 = arith.constant 0 : index
    %c0_53 = arith.constant 0 : index
    %117 = vector.load %arg14[%c0_51, %c0_52, %c0_53] : memref<1x1x32xf32, #tpu.memory_space<vmem>>, vector<1x1x32xf32>
    %118 = vector.shape_cast %117 : vector<1x1x32xf32> to vector<1x32xf32>
    %cst_54 = arith.constant dense<0.000000e+00> : vector<16xf32>
    %119 = vector.multi_reduction <add>, %114, %cst_54 [1] : vector<16x32xf32> to vector<16xf32>
    %120 = vector.shape_cast %119 : vector<16xf32> to vector<16x1xf32>
    %cst_55 = arith.constant 3.200000e+01 : f32
    %121 = vector.broadcast %cst_55 : f32 to vector<16x1xf32>
    %122 = arith.divf %120, %121 : vector<16x1xf32>
    %123 = vector.broadcast %122 : vector<16x1xf32> to vector<16x32xf32>
    %124 = arith.subf %114, %123 : vector<16x32xf32>
    %125 = arith.mulf %124, %124 : vector<16x32xf32>
    %cst_56 = arith.constant dense<0.000000e+00> : vector<16xf32>
    %126 = vector.multi_reduction <add>, %125, %cst_56 [1] : vector<16x32xf32> to vector<16xf32>
    %127 = vector.shape_cast %126 : vector<16xf32> to vector<16x1xf32>
    %cst_57 = arith.constant 3.200000e+01 : f32
    %128 = vector.broadcast %cst_57 : f32 to vector<16x1xf32>
    %129 = arith.divf %127, %128 : vector<16x1xf32>
    %130 = vector.broadcast %122 : vector<16x1xf32> to vector<16x32xf32>
    %131 = arith.subf %114, %130 : vector<16x32xf32>
    %cst_58 = arith.constant 9.99999996E-13 : f32
    %132 = vector.broadcast %cst_58 : f32 to vector<16x1xf32>
    %133 = arith.addf %129, %132 : vector<16x1xf32>
    %134 = math.rsqrt %133 : vector<16x1xf32>
    %135 = vector.broadcast %134 : vector<16x1xf32> to vector<16x32xf32>
    %136 = arith.mulf %131, %135 : vector<16x32xf32>
    %137 = vector.broadcast %116 : vector<1x32xf32> to vector<16x32xf32>
    %138 = arith.mulf %136, %137 : vector<16x32xf32>
    %139 = vector.broadcast %118 : vector<1x32xf32> to vector<16x32xf32>
    %140 = arith.addf %138, %139 : vector<16x32xf32>
    %141 = arith.truncf %140 : vector<16x32xf32> to vector<16x32xbf16>
    %c0_59 = arith.constant 0 : index
    %c0_60 = arith.constant 0 : index
    %c0_61 = arith.constant 0 : index
    %142 = vector.load %arg15[%c0_59, %c0_60, %c0_61] : memref<1x32x64xbf16, #tpu.memory_space<vmem>>, vector<1x32x64xbf16>
    %143 = vector.shape_cast %142 : vector<1x32x64xbf16> to vector<32x64xbf16>
    %cst_62 = arith.constant dense<0.000000e+00> : vector<16x64xf32>
    %144 = tpu.matmul %141, %143, %cst_62 {dimension_numbers = #tpu.dot_dimension_numbers<[1], [0], [0], [1], [0, 0, 1, 1], [], []>} : vector<16x32xbf16>, vector<32x64xbf16>, vector<16x64xf32> -> vector<16x64xf32>
    %c0_63 = arith.constant 0 : index
    %c0_64 = arith.constant 0 : index
    %c0_65 = arith.constant 0 : index
    %145 = vector.load %arg16[%c0_63, %c0_64, %c0_65] : memref<1x1x64xf32, #tpu.memory_space<vmem>>, vector<1x1x64xf32>
    %146 = vector.shape_cast %145 : vector<1x1x64xf32> to vector<1x64xf32>
    %147 = vector.broadcast %146 : vector<1x64xf32> to vector<16x64xf32>
    %148 = arith.addf %144, %147 : vector<16x64xf32>
    %149 = arith.mulf %148, %148 : vector<16x64xf32>
    %150 = arith.mulf %148, %149 : vector<16x64xf32>
    %cst_66 = arith.constant 4.471500e-02 : f32
    %151 = vector.broadcast %cst_66 : f32 to vector<16x64xf32>
    %152 = arith.mulf %151, %150 : vector<16x64xf32>
    %153 = arith.addf %148, %152 : vector<16x64xf32>
    %cst_67 = arith.constant 0.797884583 : f32
    %154 = vector.broadcast %cst_67 : f32 to vector<16x64xf32>
    %155 = arith.mulf %154, %153 : vector<16x64xf32>
    %156 = math.tanh %155 : vector<16x64xf32>
    %cst_68 = arith.constant 1.000000e+00 : f32
    %157 = vector.broadcast %cst_68 : f32 to vector<16x64xf32>
    %158 = arith.addf %157, %156 : vector<16x64xf32>
    %cst_69 = arith.constant 5.000000e-01 : f32
    %159 = vector.broadcast %cst_69 : f32 to vector<16x64xf32>
    %160 = arith.mulf %159, %158 : vector<16x64xf32>
    %161 = arith.mulf %148, %160 : vector<16x64xf32>
    %162 = arith.truncf %161 : vector<16x64xf32> to vector<16x64xbf16>
    %c0_70 = arith.constant 0 : index
    %c0_71 = arith.constant 0 : index
    %c0_72 = arith.constant 0 : index
    %163 = vector.load %arg17[%c0_70, %c0_71, %c0_72] : memref<1x64x32xbf16, #tpu.memory_space<vmem>>, vector<1x64x32xbf16>
    %164 = vector.shape_cast %163 : vector<1x64x32xbf16> to vector<64x32xbf16>
    %cst_73 = arith.constant dense<0.000000e+00> : vector<16x32xf32>
    %165 = tpu.matmul %162, %164, %cst_73 {dimension_numbers = #tpu.dot_dimension_numbers<[1], [0], [0], [1], [0, 0, 1, 1], [], []>} : vector<16x64xbf16>, vector<64x32xbf16>, vector<16x32xf32> -> vector<16x32xf32>
    %c0_74 = arith.constant 0 : index
    %c0_75 = arith.constant 0 : index
    %c0_76 = arith.constant 0 : index
    %166 = vector.load %arg18[%c0_74, %c0_75, %c0_76] : memref<1x1x32xf32, #tpu.memory_space<vmem>>, vector<1x1x32xf32>
    %167 = vector.shape_cast %166 : vector<1x1x32xf32> to vector<1x32xf32>
    %168 = vector.broadcast %167 : vector<1x32xf32> to vector<16x32xf32>
    %169 = arith.addf %165, %168 : vector<16x32xf32>
    %170 = arith.addf %169, %140 : vector<16x32xf32>
    %c0_77 = arith.constant 0 : index
    %c0_78 = arith.constant 0 : index
    %c0_79 = arith.constant 0 : index
    %171 = vector.load %arg19[%c0_77, %c0_78, %c0_79] : memref<1x1x32xf32, #tpu.memory_space<vmem>>, vector<1x1x32xf32>
    %172 = vector.shape_cast %171 : vector<1x1x32xf32> to vector<1x32xf32>
    %c0_80 = arith.constant 0 : index
    %c0_81 = arith.constant 0 : index
    %c0_82 = arith.constant 0 : index
    %173 = vector.load %arg20[%c0_80, %c0_81, %c0_82] : memref<1x1x32xf32, #tpu.memory_space<vmem>>, vector<1x1x32xf32>
    %174 = vector.shape_cast %173 : vector<1x1x32xf32> to vector<1x32xf32>
    %cst_83 = arith.constant dense<0.000000e+00> : vector<16xf32>
    %175 = vector.multi_reduction <add>, %170, %cst_83 [1] : vector<16x32xf32> to vector<16xf32>
    %176 = vector.shape_cast %175 : vector<16xf32> to vector<16x1xf32>
    %cst_84 = arith.constant 3.200000e+01 : f32
    %177 = vector.broadcast %cst_84 : f32 to vector<16x1xf32>
    %178 = arith.divf %176, %177 : vector<16x1xf32>
    %179 = vector.broadcast %178 : vector<16x1xf32> to vector<16x32xf32>
    %180 = arith.subf %170, %179 : vector<16x32xf32>
    %181 = arith.mulf %180, %180 : vector<16x32xf32>
    %cst_85 = arith.constant dense<0.000000e+00> : vector<16xf32>
    %182 = vector.multi_reduction <add>, %181, %cst_85 [1] : vector<16x32xf32> to vector<16xf32>
    %183 = vector.shape_cast %182 : vector<16xf32> to vector<16x1xf32>
    %cst_86 = arith.constant 3.200000e+01 : f32
    %184 = vector.broadcast %cst_86 : f32 to vector<16x1xf32>
    %185 = arith.divf %183, %184 : vector<16x1xf32>
    %186 = vector.broadcast %178 : vector<16x1xf32> to vector<16x32xf32>
    %187 = arith.subf %170, %186 : vector<16x32xf32>
    %cst_87 = arith.constant 9.99999996E-13 : f32
    %188 = vector.broadcast %cst_87 : f32 to vector<16x1xf32>
    %189 = arith.addf %185, %188 : vector<16x1xf32>
    %190 = math.rsqrt %189 : vector<16x1xf32>
    %191 = vector.broadcast %190 : vector<16x1xf32> to vector<16x32xf32>
    %192 = arith.mulf %187, %191 : vector<16x32xf32>
    %193 = vector.broadcast %172 : vector<1x32xf32> to vector<16x32xf32>
    %194 = arith.mulf %192, %193 : vector<16x32xf32>
    %195 = vector.broadcast %174 : vector<1x32xf32> to vector<16x32xf32>
    %196 = arith.addf %194, %195 : vector<16x32xf32>
    %c0_88 = arith.constant 0 : index
    %c0_89 = arith.constant 0 : index
    %197 = vector.load %arg22[%c0_88, %c0_89] : memref<16x32xf32, #tpu.memory_space<vmem>>, vector<16x32xf32>
    tpu.vector_store %arg22[%c0_88, %c0_89], %196 {strides = array<i32>} : memref<16x32xf32, #tpu.memory_space<vmem>>, vector<16x32xf32>,
    %c1_i32 = arith.constant 1 : i32
    %198 = arith.cmpi eq, %arg0, %c1_i32 : i32
    %199 = arith.extui %198 : i1 to i32
    %c0_i32_90 = arith.constant 0 : i32
    %200 = arith.cmpi ne, %199, %c0_i32_90 : i32
    scf.if %200 {
      %c0_91 = arith.constant 0 : index
      %c0_92 = arith.constant 0 : index
      %201 = vector.load %arg21[%c0_91, %c0_92] : memref<16x32xf32, #tpu.memory_space<vmem>>, vector<16x32xf32>
      tpu.vector_store %arg21[%c0_91, %c0_92], %196 {strides = array<i32>} : memref<16x32xf32, #tpu.memory_space<vmem>>, vector<16x32xf32>,
    } else {
    }
    return
  }
  func.func @transform_0(%arg0: i32) -> (i32, i32) {
    %c0_i32 = arith.constant 0 : i32
    %c0_i32_0 = arith.constant 0 : i32
    %c0_i32_1 = arith.constant 0 : i32
    return %c0_i32, %c0_i32_0 : i32, i32
  }
  func.func @transform_1(%arg0: i32) -> (i32, i32) {
    %c0_i32 = arith.constant 0 : i32
    %c0_i32_0 = arith.constant 0 : i32
    %c0_i32_1 = arith.constant 0 : i32
    return %c0_i32, %c0_i32_0 : i32, i32
  }
  func.func @transform_2(%arg0: i32) -> (i32, i32) {
    %c0_i32 = arith.constant 0 : i32
    %c0_i32_0 = arith.constant 0 : i32
    %c0_i32_1 = arith.constant 0 : i32
    return %c0_i32, %c0_i32_0 : i32, i32
  }
  func.func @transform_3(%arg0: i32) -> (i32, i32) {
    %c0_i32 = arith.constant 0 : i32
    %c0_i32_0 = arith.constant 0 : i32
    %c0_i32_1 = arith.constant 0 : i32
    return %c0_i32, %c0_i32_0 : i32, i32
  }
  func.func @transform_4(%arg0: i32) -> (i32, i32, i32) {
    %c0_i32 = arith.constant 0 : i32
    %c0_i32_0 = arith.constant 0 : i32
    %c0_i32_1 = arith.constant 0 : i32
    return %arg0, %c0_i32, %c0_i32_0 : i32, i32, i32
  }
  func.func @transform_5(%arg0: i32) -> (i32, i32, i32) {
    %c0_i32 = arith.constant 0 : i32
    %c0_i32_0 = arith.constant 0 : i32
    %c0_i32_1 = arith.constant 0 : i32
    return %arg0, %c0_i32, %c0_i32_0 : i32, i32, i32
  }
  func.func @transform_6(%arg0: i32) -> (i32, i32, i32) {
    %c0_i32 = arith.constant 0 : i32
    %c0_i32_0 = arith.constant 0 : i32
    %c0_i32_1 = arith.constant 0 : i32
    return %arg0, %c0_i32, %c0_i32_0 : i32, i32, i32
  }
  func.func @transform_7(%arg0: i32) -> (i32, i32, i32) {
    %c0_i32 = arith.constant 0 : i32
    %c0_i32_0 = arith.constant 0 : i32
    %c0_i32_1 = arith.constant 0 : i32
    return %arg0, %c0_i32, %c0_i32_0 : i32, i32, i32
  }
  func.func @transform_8(%arg0: i32) -> (i32, i32, i32) {
    %c0_i32 = arith.constant 0 : i32
    %c0_i32_0 = arith.constant 0 : i32
    %c0_i32_1 = arith.constant 0 : i32
    return %arg0, %c0_i32, %c0_i32_0 : i32, i32, i32
  }
  func.func @transform_9(%arg0: i32) -> (i32, i32, i32) {
    %c0_i32 = arith.constant 0 : i32
    %c0_i32_0 = arith.constant 0 : i32
    %c0_i32_1 = arith.constant 0 : i32
    return %arg0, %c0_i32, %c0_i32_0 : i32, i32, i32
  }
  func.func @transform_10(%arg0: i32) -> (i32, i32, i32) {
    %c0_i32 = arith.constant 0 : i32
    %c0_i32_0 = arith.constant 0 : i32
    %c0_i32_1 = arith.constant 0 : i32
    return %arg0, %c0_i32, %c0_i32_0 : i32, i32, i32
  }
  func.func @transform_11(%arg0: i32) -> (i32, i32, i32) {
    %c0_i32 = arith.constant 0 : i32
    %c0_i32_0 = arith.constant 0 : i32
    %c0_i32_1 = arith.constant 0 : i32
    return %arg0, %c0_i32, %c0_i32_0 : i32, i32, i32
  }
  func.func @transform_12(%arg0: i32) -> (i32, i32, i32) {
    %c0_i32 = arith.constant 0 : i32
    %c0_i32_0 = arith.constant 0 : i32
    %c0_i32_1 = arith.constant 0 : i32
    return %arg0, %c0_i32, %c0_i32_0 : i32, i32, i32
  }
  func.func @transform_13(%arg0: i32) -> (i32, i32, i32) {
    %c0_i32 = arith.constant 0 : i32
    %c0_i32_0 = arith.constant 0 : i32
    %c0_i32_1 = arith.constant 0 : i32
    return %arg0, %c0_i32, %c0_i32_0 : i32, i32, i32
  }
  func.func @transform_14(%arg0: i32) -> (i32, i32, i32) {
    %c0_i32 = arith.constant 0 : i32
    %c0_i32_0 = arith.constant 0 : i32
    %c0_i32_1 = arith.constant 0 : i32
    return %arg0, %c0_i32, %c0_i32_0 : i32, i32, i32
  }
  func.func @transform_15(%arg0: i32) -> (i32, i32, i32) {
    %c0_i32 = arith.constant 0 : i32
    %c0_i32_0 = arith.constant 0 : i32
    %c0_i32_1 = arith.constant 0 : i32
    return %arg0, %c0_i32, %c0_i32_0 : i32, i32, i32
  }
  func.func @transform_16(%arg0: i32) -> (i32, i32, i32) {
    %c0_i32 = arith.constant 0 : i32
    %c0_i32_0 = arith.constant 0 : i32
    %c0_i32_1 = arith.constant 0 : i32
    return %arg0, %c0_i32, %c0_i32_0 : i32, i32, i32
  }
  func.func @transform_17(%arg0: i32) -> (i32, i32, i32) {
    %c0_i32 = arith.constant 0 : i32
    %c0_i32_0 = arith.constant 0 : i32
    %c0_i32_1 = arith.constant 0 : i32
    return %arg0, %c0_i32, %c0_i32_0 : i32, i32, i32
  }
  func.func @transform_18(%arg0: i32) -> (i32, i32, i32) {
    %c0_i32 = arith.constant 0 : i32
    %c0_i32_0 = arith.constant 0 : i32
    %c0_i32_1 = arith.constant 0 : i32
    return %arg0, %c0_i32, %c0_i32_0 : i32, i32, i32
  }
  func.func @transform_19(%arg0: i32) -> (i32, i32, i32) {
    %c0_i32 = arith.constant 0 : i32
    %c0_i32_0 = arith.constant 0 : i32
    %c0_i32_1 = arith.constant 0 : i32
    return %arg0, %c0_i32, %c0_i32_0 : i32, i32, i32
  }
  func.func @transform_20(%arg0: i32) -> (i32, i32) {
    %c0_i32 = arith.constant 0 : i32
    %c0_i32_0 = arith.constant 0 : i32
    %c0_i32_1 = arith.constant 0 : i32
    return %c0_i32, %c0_i32_0 : i32, i32
  }
}

</mosaic_0001>

<llo_original>
// kernel: bert_forward.1
$region0: #{bert_forward.1}
  #allocation0 [shape = 'u32[]', space=smem, size = 0x4, offset = 0x4, fixed_abs, tag = 'smem constant byte address 0x4 - core index']
  #allocation1 [shape = 'u32[144,128]{1,0:T(1,128)}', space=vmem, size = 0x12000, scoped, tag = 'internal scratch']
  #allocation2 [shape = 'f32[16,32]{1,0:T(8,128)}', space=vmem, size = 0x2000, scoped, tag = 'scratch operand']
  %s0 = inlined_call_operand.vmem [shape: f32[16,32], index: 0, kind: input, shape index: {}]
  %s1 = inlined_call_operand.vmem [shape: f32[16,16], index: 1, kind: input, shape index: {}]
  %s2 = inlined_call_operand.vmem [shape: f32[1,32], index: 2, kind: input, shape index: {}]
  %s3 = inlined_call_operand.vmem [shape: f32[1,32], index: 3, kind: input, shape index: {}]
  %s4 = inlined_call_operand.vmem [shape: bf16[2,32,32], index: 4, kind: input, shape index: {}]
  %s5 = inlined_call_operand.vmem [shape: f32[2,1,32], index: 5, kind: input, shape index: {}]
  %s6 = inlined_call_operand.vmem [shape: bf16[2,32,32], index: 6, kind: input, shape index: {}]
  %s7 = inlined_call_operand.vmem [shape: f32[2,1,32], index: 7, kind: input, shape index: {}]
  %s8 = inlined_call_operand.vmem [shape: bf16[2,32,32], index: 8, kind: input, shape index: {}]
  %s9 = inlined_call_operand.vmem [shape: f32[2,1,32], index: 9, kind: input, shape index: {}]
  %s10 = inlined_call_operand.vmem [shape: bf16[2,32,32], index: 10, kind: input, shape index: {}]
  %s11 = inlined_call_operand.vmem [shape: f32[2,1,32], index: 11, kind: input, shape index: {}]
  %s12 = inlined_call_operand.vmem [shape: f32[2,1,32], index: 12, kind: input, shape index: {}]
  %s13 = inlined_call_operand.vmem [shape: f32[2,1,32], index: 13, kind: input, shape index: {}]
  %s14 = inlined_call_operand.vmem [shape: bf16[2,32,64], index: 14, kind: input, shape index: {}]
  %s15 = inlined_call_operand.vmem [shape: f32[2,1,64], index: 15, kind: input, shape index: {}]
  %s16 = inlined_call_operand.vmem [shape: bf16[2,64,32], index: 16, kind: input, shape index: {}]
  %s17 = inlined_call_operand.vmem [shape: f32[2,1,32], index: 17, kind: input, shape index: {}]
  %s18 = inlined_call_operand.vmem [shape: f32[2,1,32], index: 18, kind: input, shape index: {}]
  %s19 = inlined_call_operand.vmem [shape: f32[2,1,32], index: 19, kind: input, shape index: {}]
  %s20 = inlined_call_operand.hbm [shape: f32[16,32], index: 20, kind: output, shape index: {}]
  %s21 = sld [smem:[#allocation0]]
  $region121: #{bert_forward.1} parent=0
    _
  %s23 = ssub.s32 1, %s21
  %s24 = scalar_select 0, %s23, %s21
  $region1: #{bert_forward.1} parent=0
    #allocation3 [shape = 'u8[8192]{0}', space=vmem, size = 0x2000, scoped, tag = 'output window, operand 0, single buffered']
    #allocation4 [shape = 's32[2]{0}', space=sflag, size = 0x8, scoped, tag = 'scoped memory for bert_forward.1']
    %25 = vsyncpa [#allocation4], 0
    loop: start=0, step=1, limit=4
    $region2: #{bert_forward.1} parent=1 // loop_pre_header
      _
    $region3: #{bert_forward.1} parent=1 // loop_header
      %s27 = sphi 0, %s31
      %p28 = scmp.ge.s32.totalorder %s27, 4
      %s35 = sphi 0, %s35
      %s37 = sphi 0, %s35
      %s38 = sphi 0, %s37
      %s52 = sphi 0, %s38
      %s56 = sphi 0, %s56
      %s58 = sphi 0, %s56
      %s59 = sphi 0, %s58
      %s73 = sphi 0, %s59
      %s77 = sphi 0, %s77
      %s79 = sphi 0, %s77
      %s80 = sphi 0, %s79
      %s94 = sphi 0, %s80
      %s98 = sphi 0, %s98
      %s100 = sphi 0, %s98
      %s101 = sphi 0, %s100
      %s115 = sphi 0, %s101
      %s121 = sphi 0, %s123
      %s124 = sphi 0, %s121
      %s125 = sphi 0, %s124
      %s141 = sphi 0, %s125
      %s147 = sphi 0, %s149
      %s150 = sphi 0, %s147
      %s151 = sphi 0, %s150
      %s167 = sphi 0, %s151
      %s173 = sphi 0, %s175
      %s176 = sphi 0, %s173
      %s177 = sphi 0, %s176
      %s193 = sphi 0, %s177
      %s199 = sphi 0, %s201
      %s202 = sphi 0, %s199
      %s203 = sphi 0, %s202
      %s219 = sphi 0, %s203
      %s225 = sphi 0, %s227
      %s228 = sphi 0, %s225
      %s229 = sphi 0, %s228
      %s245 = sphi 0, %s229
      %s251 = sphi 0, %s253
      %s254 = sphi 0, %s251
      %s255 = sphi 0, %s254
      %s271 = sphi 0, %s255
      %s277 = sphi 0, %s279
      %s280 = sphi 0, %s277
      %s281 = sphi 0, %s280
      %s297 = sphi 0, %s281
      %s303 = sphi 0, %s305
      %s306 = sphi 0, %s303
      %s307 = sphi 0, %s306
      %s323 = sphi 0, %s307
      %s329 = sphi 0, %s331
      %s332 = sphi 0, %s329
      %s333 = sphi 0, %s332
      %s349 = sphi 0, %s333
      %s355 = sphi 0, %s357
      %s358 = sphi 0, %s355
      %s359 = sphi 0, %s358
      %s375 = sphi 0, %s359
      %s381 = sphi 0, %s383
      %s384 = sphi 0, %s381
      %s385 = sphi 0, %s384
      %s401 = sphi 0, %s385
      %s407 = sphi 0, %s409
      %s410 = sphi 0, %s407
      %s411 = sphi 0, %s410
      %s427 = sphi 0, %s411
      %s433 = sphi 0, %s435
      %s436 = sphi 0, %s433
      %s437 = sphi 0, %s436
      %s453 = sphi 0, %s437
      %s459 = sphi 0, %s461
      %s462 = sphi 0, %s459
      %s463 = sphi 0, %s462
      %s479 = sphi 0, %s463
      %s485 = sphi 0, %s487
      %s488 = sphi 0, %s485
      %s489 = sphi 0, %s488
      %s505 = sphi 0, %s489
      %s511 = sphi 0, %s513
      %s514 = sphi 0, %s511
      %s515 = sphi 0, %s514
      %s531 = sphi 0, %s515
      %s535 = sphi 0, %s535
      %s537 = sphi 0, %s535
      %s538 = sphi 0, %s537
      %s552 = sphi 0, %s538
    $region4: #{bert_forward.1} parent=1 // loop_header_branch
      %30 = sbr.rel (%p28) target = $region8
    $region5: #{bert_forward.1} parent=1 // loop_body
      %s32 = ssub.s32 %s27, 1
      %s33 = ssub.s32 %s27, 2
      %s34 = sadd.s32 %s27, 1
      %s36 = sadd.s32 %s35, 1
      %p39 = scmp.eq.s32.totalorder %s27, 1
      %p40 = scmp.ne.s32.totalorder %s35, %s37
      %p41 = scmp.eq.s32.totalorder %s27, 0
      %p42 = por %p40, %p41
      %p43 = scmp.ne.s32.totalorder %s35, %s37
      %p44 = scmp.eq.s32.totalorder %s32, 1
      %p45 = por %p43, %p44
      %p46 = scmp.ne.s32.totalorder %s37, %s38
      %p47 = scmp.eq.s32.totalorder %s32, 0
      %p48 = por %p46, %p47
      %p49 = scmp.ne.s32.totalorder %s37, %s38
      %p50 = scmp.eq.s32.totalorder %s33, 1
      %p51 = por %p49, %p50
      %p53 = scmp.ne.s32.totalorder %s38, %s52
      %p54 = scmp.eq.s32.totalorder %s33, 0
      %p55 = por %p53, %p54
      %s57 = sadd.s32 %s56, 1
      %p60 = scmp.eq.s32.totalorder %s27, 1
      %p61 = scmp.ne.s32.totalorder %s56, %s58
      %p62 = scmp.eq.s32.totalorder %s27, 0
      %p63 = por %p61, %p62
      %p64 = scmp.ne.s32.totalorder %s56, %s58
      %p65 = scmp.eq.s32.totalorder %s32, 1
      %p66 = por %p64, %p65
      %p67 = scmp.ne.s32.totalorder %s58, %s59
      %p68 = scmp.eq.s32.totalorder %s32, 0
      %p69 = por %p67, %p68
      %p70 = scmp.ne.s32.totalorder %s58, %s59
      %p71 = scmp.eq.s32.totalorder %s33, 1
      %p72 = por %p70, %p71
      %p74 = scmp.ne.s32.totalorder %s59, %s73
      %p75 = scmp.eq.s32.totalorder %s33, 0
      %p76 = por %p74, %p75
      %s78 = sadd.s32 %s77, 1
      %p81 = scmp.eq.s32.totalorder %s27, 1
      %p82 = scmp.ne.s32.totalorder %s77, %s79
      %p83 = scmp.eq.s32.totalorder %s27, 0
      %p84 = por %p82, %p83
      %p85 = scmp.ne.s32.totalorder %s77, %s79
      %p86 = scmp.eq.s32.totalorder %s32, 1
      %p87 = por %p85, %p86
      %p88 = scmp.ne.s32.totalorder %s79, %s80
      %p89 = scmp.eq.s32.totalorder %s32, 0
      %p90 = por %p88, %p89
      %p91 = scmp.ne.s32.totalorder %s79, %s80
      %p92 = scmp.eq.s32.totalorder %s33, 1
      %p93 = por %p91, %p92
      %p95 = scmp.ne.s32.totalorder %s80, %s94
      %p96 = scmp.eq.s32.totalorder %s33, 0
      %p97 = por %p95, %p96
      %s99 = sadd.s32 %s98, 1
      %p102 = scmp.eq.s32.totalorder %s27, 1
      %p103 = scmp.ne.s32.totalorder %s98, %s100
      %p104 = scmp.eq.s32.totalorder %s27, 0
      %p105 = por %p103, %p104
      %p106 = scmp.ne.s32.totalorder %s98, %s100
      %p107 = scmp.eq.s32.totalorder %s32, 1
      %p108 = por %p106, %p107
      %p109 = scmp.ne.s32.totalorder %s100, %s101
      %p110 = scmp.eq.s32.totalorder %s32, 0
      %p111 = por %p109, %p110
      %p112 = scmp.ne.s32.totalorder %s100, %s101
      %p113 = scmp.eq.s32.totalorder %s33, 1
      %p114 = por %p112, %p113
      %p116 = scmp.ne.s32.totalorder %s101, %s115
      %p117 = scmp.eq.s32.totalorder %s33, 0
      %p118 = por %p116, %p117
      %s119 = ssub.s32 %s27, %s34
      %p120 = scmp.eq.s32.totalorder %s119, 0
      %s122 = sadd.s32 %s121, 1
      %s123 = scalar_select %p120, %s121, %s122
      %p126 = pneg %p120
      %p127 = scmp.eq.s32.totalorder %s27, 1
      %p128 = por %p126, %p127
      %p129 = scmp.ne.s32.totalorder %s121, %s124
      %p130 = scmp.eq.s32.totalorder %s27, 0
      %p131 = por %p129, %p130
      %p132 = scmp.ne.s32.totalorder %s121, %s124
      %p133 = scmp.eq.s32.totalorder %s32, 1
      %p134 = por %p132, %p133
      %p135 = scmp.ne.s32.totalorder %s124, %s125
      %p136 = scmp.eq.s32.totalorder %s32, 0
      %p137 = por %p135, %p136
      %p138 = scmp.ne.s32.totalorder %s124, %s125
      %p139 = scmp.eq.s32.totalorder %s33, 1
      %p140 = por %p138, %p139
      %p142 = scmp.ne.s32.totalorder %s125, %s141
      %p143 = scmp.eq.s32.totalorder %s33, 0
      %p144 = por %p142, %p143
      %s145 = ssub.s32 %s27, %s34
      %p146 = scmp.eq.s32.totalorder %s145, 0
      %s148 = sadd.s32 %s147, 1
      %s149 = scalar_select %p146, %s147, %s148
      %p152 = pneg %p146
      %p153 = scmp.eq.s32.totalorder %s27, 1
      %p154 = por %p152, %p153
      %p155 = scmp.ne.s32.totalorder %s147, %s150
      %p156 = scmp.eq.s32.totalorder %s27, 0
      %p157 = por %p155, %p156
      %p158 = scmp.ne.s32.totalorder %s147, %s150
      %p159 = scmp.eq.s32.totalorder %s32, 1
      %p160 = por %p158, %p159
      %p161 = scmp.ne.s32.totalorder %s150, %s151
      %p162 = scmp.eq.s32.totalorder %s32, 0
      %p163 = por %p161, %p162
      %p164 = scmp.ne.s32.totalorder %s150, %s151
      %p165 = scmp.eq.s32.totalorder %s33, 1
      %p166 = por %p164, %p165
      %p168 = scmp.ne.s32.totalorder %s151, %s167
      %p169 = scmp.eq.s32.totalorder %s33, 0
      %p170 = por %p168, %p169
      %s171 = ssub.s32 %s27, %s34
      %p172 = scmp.eq.s32.totalorder %s171, 0
      %s174 = sadd.s32 %s173, 1
      %s175 = scalar_select %p172, %s173, %s174
      %p178 = pneg %p172
      %p179 = scmp.eq.s32.totalorder %s27, 1
      %p180 = por %p178, %p179
      %p181 = scmp.ne.s32.totalorder %s173, %s176
      %p182 = scmp.eq.s32.totalorder %s27, 0
      %p183 = por %p181, %p182
      %p184 = scmp.ne.s32.totalorder %s173, %s176
      %p185 = scmp.eq.s32.totalorder %s32, 1
      %p186 = por %p184, %p185
      %p187 = scmp.ne.s32.totalorder %s176, %s177
      %p188 = scmp.eq.s32.totalorder %s32, 0
      %p189 = por %p187, %p188
      %p190 = scmp.ne.s32.totalorder %s176, %s177
      %p191 = scmp.eq.s32.totalorder %s33, 1
      %p192 = por %p190, %p191
      %p194 = scmp.ne.s32.totalorder %s177, %s193
      %p195 = scmp.eq.s32.totalorder %s33, 0
      %p196 = por %p194, %p195
      %s197 = ssub.s32 %s27, %s34
      %p198 = scmp.eq.s32.totalorder %s197, 0
      %s200 = sadd.s32 %s199, 1
      %s201 = scalar_select %p198, %s199, %s200
      %p204 = pneg %p198
      %p205 = scmp.eq.s32.totalorder %s27, 1
      %p206 = por %p204, %p205
      %p207 = scmp.ne.s32.totalorder %s199, %s202
      %p208 = scmp.eq.s32.totalorder %s27, 0
      %p209 = por %p207, %p208
      %p210 = scmp.ne.s32.totalorder %s199, %s202
      %p211 = scmp.eq.s32.totalorder %s32, 1
      %p212 = por %p210, %p211
      %p213 = scmp.ne.s32.totalorder %s202, %s203
      %p214 = scmp.eq.s32.totalorder %s32, 0
      %p215 = por %p213, %p214
      %p216 = scmp.ne.s32.totalorder %s202, %s203
      %p217 = scmp.eq.s32.totalorder %s33, 1
      %p218 = por %p216, %p217
      %p220 = scmp.ne.s32.totalorder %s203, %s219
      %p221 = scmp.eq.s32.totalorder %s33, 0
      %p222 = por %p220, %p221
      %s223 = ssub.s32 %s27, %s34
      %p224 = scmp.eq.s32.totalorder %s223, 0
      %s226 = sadd.s32 %s225, 1
      %s227 = scalar_select %p224, %s225, %s226
      %p230 = pneg %p224
      %p231 = scmp.eq.s32.totalorder %s27, 1
      %p232 = por %p230, %p231
      %p233 = scmp.ne.s32.totalorder %s225, %s228
      %p234 = scmp.eq.s32.totalorder %s27, 0
      %p235 = por %p233, %p234
      %p236 = scmp.ne.s32.totalorder %s225, %s228
      %p237 = scmp.eq.s32.totalorder %s32, 1
      %p238 = por %p236, %p237
      %p239 = scmp.ne.s32.totalorder %s228, %s229
      %p240 = scmp.eq.s32.totalorder %s32, 0
      %p241 = por %p239, %p240
      %p242 = scmp.ne.s32.totalorder %s228, %s229
      %p243 = scmp.eq.s32.totalorder %s33, 1
      %p244 = por %p242, %p243
      %p246 = scmp.ne.s32.totalorder %s229, %s245
      %p247 = scmp.eq.s32.totalorder %s33, 0
      %p248 = por %p246, %p247
      %s249 = ssub.s32 %s27, %s34
      %p250 = scmp.eq.s32.totalorder %s249, 0
      %s252 = sadd.s32 %s251, 1
      %s253 = scalar_select %p250, %s251, %s252
      %p256 = pneg %p250
      %p257 = scmp.eq.s32.totalorder %s27, 1
      %p258 = por %p256, %p257
      %p259 = scmp.ne.s32.totalorder %s251, %s254
      %p260 = scmp.eq.s32.totalorder %s27, 0
      %p261 = por %p259, %p260
      %p262 = scmp.ne.s32.totalorder %s251, %s254
      %p263 = scmp.eq.s32.totalorder %s32, 1
      %p264 = por %p262, %p263
      %p265 = scmp.ne.s32.totalorder %s254, %s255
      %p266 = scmp.eq.s32.totalorder %s32, 0
      %p267 = por %p265, %p266
      %p268 = scmp.ne.s32.totalorder %s254, %s255
      %p269 = scmp.eq.s32.totalorder %s33, 1
      %p270 = por %p268, %p269
      %p272 = scmp.ne.s32.totalorder %s255, %s271
      %p273 = scmp.eq.s32.totalorder %s33, 0
      %p274 = por %p272, %p273
      %s275 = ssub.s32 %s27, %s34
      %p276 = scmp.eq.s32.totalorder %s275, 0
      %s278 = sadd.s32 %s277, 1
      %s279 = scalar_select %p276, %s277, %s278
      %p282 = pneg %p276
      %p283 = scmp.eq.s32.totalorder %s27, 1
      %p284 = por %p282, %p283
      %p285 = scmp.ne.s32.totalorder %s277, %s280
      %p286 = scmp.eq.s32.totalorder %s27, 0
      %p287 = por %p285, %p286
      %p288 = scmp.ne.s32.totalorder %s277, %s280
      %p289 = scmp.eq.s32.totalorder %s32, 1
      %p290 = por %p288, %p289
      %p291 = scmp.ne.s32.totalorder %s280, %s281
      %p292 = scmp.eq.s32.totalorder %s32, 0
      %p293 = por %p291, %p292
      %p294 = scmp.ne.s32.totalorder %s280, %s281
      %p295 = scmp.eq.s32.totalorder %s33, 1
      %p296 = por %p294, %p295
      %p298 = scmp.ne.s32.totalorder %s281, %s297
      %p299 = scmp.eq.s32.totalorder %s33, 0
      %p300 = por %p298, %p299
      %s301 = ssub.s32 %s27, %s34
      %p302 = scmp.eq.s32.totalorder %s301, 0
      %s304 = sadd.s32 %s303, 1
      %s305 = scalar_select %p302, %s303, %s304
      %p308 = pneg %p302
      %p309 = scmp.eq.s32.totalorder %s27, 1
      %p310 = por %p308, %p309
      %p311 = scmp.ne.s32.totalorder %s303, %s306
      %p312 = scmp.eq.s32.totalorder %s27, 0
      %p313 = por %p311, %p312
      %p314 = scmp.ne.s32.totalorder %s303, %s306
      %p315 = scmp.eq.s32.totalorder %s32, 1
      %p316 = por %p314, %p315
      %p317 = scmp.ne.s32.totalorder %s306, %s307
      %p318 = scmp.eq.s32.totalorder %s32, 0
      %p319 = por %p317, %p318
      %p320 = scmp.ne.s32.totalorder %s306, %s307
      %p321 = scmp.eq.s32.totalorder %s33, 1
      %p322 = por %p320, %p321
      %p324 = scmp.ne.s32.totalorder %s307, %s323
      %p325 = scmp.eq.s32.totalorder %s33, 0
      %p326 = por %p324, %p325
      %s327 = ssub.s32 %s27, %s34
      %p328 = scmp.eq.s32.totalorder %s327, 0
      %s330 = sadd.s32 %s329, 1
      %s331 = scalar_select %p328, %s329, %s330
      %p334 = pneg %p328
      %p335 = scmp.eq.s32.totalorder %s27, 1
      %p336 = por %p334, %p335
      %p337 = scmp.ne.s32.totalorder %s329, %s332
      %p338 = scmp.eq.s32.totalorder %s27, 0
      %p339 = por %p337, %p338
      %p340 = scmp.ne.s32.totalorder %s329, %s332
      %p341 = scmp.eq.s32.totalorder %s32, 1
      %p342 = por %p340, %p341
      %p343 = scmp.ne.s32.totalorder %s332, %s333
      %p344 = scmp.eq.s32.totalorder %s32, 0
      %p345 = por %p343, %p344
      %p346 = scmp.ne.s32.totalorder %s332, %s333
      %p347 = scmp.eq.s32.totalorder %s33, 1
      %p348 = por %p346, %p347
      %p350 = scmp.ne.s32.totalorder %s333, %s349
      %p351 = scmp.eq.s32.totalorder %s33, 0
      %p352 = por %p350, %p351
      %s353 = ssub.s32 %s27, %s34
      %p354 = scmp.eq.s32.totalorder %s353, 0
      %s356 = sadd.s32 %s355, 1
      %s357 = scalar_select %p354, %s355, %s356
      %p360 = pneg %p354
      %p361 = scmp.eq.s32.totalorder %s27, 1
      %p362 = por %p360, %p361
      %p363 = scmp.ne.s32.totalorder %s355, %s358
      %p364 = scmp.eq.s32.totalorder %s27, 0
      %p365 = por %p363, %p364
      %p366 = scmp.ne.s32.totalorder %s355, %s358
      %p367 = scmp.eq.s32.totalorder %s32, 1
      %p368 = por %p366, %p367
      %p369 = scmp.ne.s32.totalorder %s358, %s359
      %p370 = scmp.eq.s32.totalorder %s32, 0
      %p371 = por %p369, %p370
      %p372 = scmp.ne.s32.totalorder %s358, %s359
      %p373 = scmp.eq.s32.totalorder %s33, 1
      %p374 = por %p372, %p373
      %p376 = scmp.ne.s32.totalorder %s359, %s375
      %p377 = scmp.eq.s32.totalorder %s33, 0
      %p378 = por %p376, %p377
      %s379 = ssub.s32 %s27, %s34
      %p380 = scmp.eq.s32.totalorder %s379, 0
      %s382 = sadd.s32 %s381, 1
      %s383 = scalar_select %p380, %s381, %s382
      %p386 = pneg %p380
      %p387 = scmp.eq.s32.totalorder %s27, 1
      %p388 = por %p386, %p387
      %p389 = scmp.ne.s32.totalorder %s381, %s384
      %p390 = scmp.eq.s32.totalorder %s27, 0
      %p391 = por %p389, %p390
      %p392 = scmp.ne.s32.totalorder %s381, %s384
      %p393 = scmp.eq.s32.totalorder %s32, 1
      %p394 = por %p392, %p393
      %p395 = scmp.ne.s32.totalorder %s384, %s385
      %p396 = scmp.eq.s32.totalorder %s32, 0
      %p397 = por %p395, %p396
      %p398 = scmp.ne.s32.totalorder %s384, %s385
      %p399 = scmp.eq.s32.totalorder %s33, 1
      %p400 = por %p398, %p399
      %p402 = scmp.ne.s32.totalorder %s385, %s401
      %p403 = scmp.eq.s32.totalorder %s33, 0
      %p404 = por %p402, %p403
      %s405 = ssub.s32 %s27, %s34
      %p406 = scmp.eq.s32.totalorder %s405, 0
      %s408 = sadd.s32 %s407, 1
      %s409 = scalar_select %p406, %s407, %s408
      %p412 = pneg %p406
      %p413 = scmp.eq.s32.totalorder %s27, 1
      %p414 = por %p412, %p413
      %p415 = scmp.ne.s32.totalorder %s407, %s410
      %p416 = scmp.eq.s32.totalorder %s27, 0
      %p417 = por %p415, %p416
      %p418 = scmp.ne.s32.totalorder %s407, %s410
      %p419 = scmp.eq.s32.totalorder %s32, 1
      %p420 = por %p418, %p419
      %p421 = scmp.ne.s32.totalorder %s410, %s411
      %p422 = scmp.eq.s32.totalorder %s32, 0
      %p423 = por %p421, %p422
      %p424 = scmp.ne.s32.totalorder %s410, %s411
      %p425 = scmp.eq.s32.totalorder %s33, 1
      %p426 = por %p424, %p425
      %p428 = scmp.ne.s32.totalorder %s411, %s427
      %p429 = scmp.eq.s32.totalorder %s33, 0
      %p430 = por %p428, %p429
      %s431 = ssub.s32 %s27, %s34
      %p432 = scmp.eq.s32.totalorder %s431, 0
      %s434 = sadd.s32 %s433, 1
      %s435 = scalar_select %p432, %s433, %s434
      %p438 = pneg %p432
      %p439 = scmp.eq.s32.totalorder %s27, 1
      %p440 = por %p438, %p439
      %p441 = scmp.ne.s32.totalorder %s433, %s436
      %p442 = scmp.eq.s32.totalorder %s27, 0
      %p443 = por %p441, %p442
      %p444 = scmp.ne.s32.totalorder %s433, %s436
      %p445 = scmp.eq.s32.totalorder %s32, 1
      %p446 = por %p444, %p445
      %p447 = scmp.ne.s32.totalorder %s436, %s437
      %p448 = scmp.eq.s32.totalorder %s32, 0
      %p449 = por %p447, %p448
      %p450 = scmp.ne.s32.totalorder %s436, %s437
      %p451 = scmp.eq.s32.totalorder %s33, 1
      %p452 = por %p450, %p451
      %p454 = scmp.ne.s32.totalorder %s437, %s453
      %p455 = scmp.eq.s32.totalorder %s33, 0
      %p456 = por %p454, %p455
      %s457 = ssub.s32 %s27, %s34
      %p458 = scmp.eq.s32.totalorder %s457, 0
      %s460 = sadd.s32 %s459, 1
      %s461 = scalar_select %p458, %s459, %s460
      %p464 = pneg %p458
      %p465 = scmp.eq.s32.totalorder %s27, 1
      %p466 = por %p464, %p465
      %p467 = scmp.ne.s32.totalorder %s459, %s462
      %p468 = scmp.eq.s32.totalorder %s27, 0
      %p469 = por %p467, %p468
      %p470 = scmp.ne.s32.totalorder %s459, %s462
      %p471 = scmp.eq.s32.totalorder %s32, 1
      %p472 = por %p470, %p471
      %p473 = scmp.ne.s32.totalorder %s462, %s463
      %p474 = scmp.eq.s32.totalorder %s32, 0
      %p475 = por %p473, %p474
      %p476 = scmp.ne.s32.totalorder %s462, %s463
      %p477 = scmp.eq.s32.totalorder %s33, 1
      %p478 = por %p476, %p477
      %p480 = scmp.ne.s32.totalorder %s463, %s479
      %p481 = scmp.eq.s32.totalorder %s33, 0
      %p482 = por %p480, %p481
      %s483 = ssub.s32 %s27, %s34
      %p484 = scmp.eq.s32.totalorder %s483, 0
      %s486 = sadd.s32 %s485, 1
      %s487 = scalar_select %p484, %s485, %s486
      %p490 = pneg %p484
      %p491 = scmp.eq.s32.totalorder %s27, 1
      %p492 = por %p490, %p491
      %p493 = scmp.ne.s32.totalorder %s485, %s488
      %p494 = scmp.eq.s32.totalorder %s27, 0
      %p495 = por %p493, %p494
      %p496 = scmp.ne.s32.totalorder %s485, %s488
      %p497 = scmp.eq.s32.totalorder %s32, 1
      %p498 = por %p496, %p497
      %p499 = scmp.ne.s32.totalorder %s488, %s489
      %p500 = scmp.eq.s32.totalorder %s32, 0
      %p501 = por %p499, %p500
      %p502 = scmp.ne.s32.totalorder %s488, %s489
      %p503 = scmp.eq.s32.totalorder %s33, 1
      %p504 = por %p502, %p503
      %p506 = scmp.ne.s32.totalorder %s489, %s505
      %p507 = scmp.eq.s32.totalorder %s33, 0
      %p508 = por %p506, %p507
      %s509 = ssub.s32 %s27, %s34
      %p510 = scmp.eq.s32.totalorder %s509, 0
      %s512 = sadd.s32 %s511, 1
      %s513 = scalar_select %p510, %s511, %s512
      %p516 = pneg %p510
      %p517 = scmp.eq.s32.totalorder %s27, 1
      %p518 = por %p516, %p517
      %p519 = scmp.ne.s32.totalorder %s511, %s514
      %p520 = scmp.eq.s32.totalorder %s27, 0
      %p521 = por %p519, %p520
      %p522 = scmp.ne.s32.totalorder %s511, %s514
      %p523 = scmp.eq.s32.totalorder %s32, 1
      %p524 = por %p522, %p523
      %p525 = scmp.ne.s32.totalorder %s514, %s515
      %p526 = scmp.eq.s32.totalorder %s32, 0
      %p527 = por %p525, %p526
      %p528 = scmp.ne.s32.totalorder %s514, %s515
      %p529 = scmp.eq.s32.totalorder %s33, 1
      %p530 = por %p528, %p529
      %p532 = scmp.ne.s32.totalorder %s515, %s531
      %p533 = scmp.eq.s32.totalorder %s33, 0
      %p534 = por %p532, %p533
      %s536 = sadd.s32 %s535, 1
      %p539 = scmp.eq.s32.totalorder %s27, 1
      %p540 = scmp.ne.s32.totalorder %s535, %s537
      %p541 = scmp.eq.s32.totalorder %s27, 0
      %p542 = por %p540, %p541
      %p543 = scmp.ne.s32.totalorder %s535, %s537
      %p544 = scmp.eq.s32.totalorder %s32, 1
      %p545 = por %p543, %p544
      %p546 = scmp.ne.s32.totalorder %s537, %s538
      %p547 = scmp.eq.s32.totalorder %s32, 0
      %p548 = por %p546, %p547
      %p549 = scmp.ne.s32.totalorder %s537, %s538
      %p550 = scmp.eq.s32.totalorder %s33, 1
      %p551 = por %p549, %p550
      %p553 = scmp.ne.s32.totalorder %s538, %s552
      %p554 = scmp.eq.s32.totalorder %s33, 0
      %p555 = por %p553, %p554
      %p556 = scmp.le.s32.totalorder 1, %s27
      %p557 = scmp.lt.s32.totalorder %s27, 3
      %p558 = pnand %p556, %p557
      %p559 = pneg %p558
      // Predicated region
      $region9: #{bert_forward.1} parent=5 // pred_check
        _
      $region10: #{bert_forward.1} parent=5 // pred_check_branch
        %561 = sbr.rel (%p558) target = $region12
      $region11: #{bert_forward.1} parent=5 // pred_region
        %s562 = ssub.s32 %s27, 1
        // Predicated region
        $region13: #{bert_forward.1} parent=11 // pred_check
          %p563 = pneg %p48
        $region14: #{bert_forward.1} parent=11 // pred_check_branch
          %565 = sbr.rel (%p563) target = $region16
        $region15: #{bert_forward.1} parent=11 // pred_region
          _
        $region16: #{bert_forward.1} parent=11 // pred_fallthru
          _
        // Predicated region
        $region17: #{bert_forward.1} parent=11 // pred_check
          %p566 = pneg %p69
        $region18: #{bert_forward.1} parent=11 // pred_check_branch
          %568 = sbr.rel (%p566) target = $region20
        $region19: #{bert_forward.1} parent=11 // pred_region
          _
        $region20: #{bert_forward.1} parent=11 // pred_fallthru
          _
        // Predicated region
        $region21: #{bert_forward.1} parent=11 // pred_check
          %p569 = pneg %p90
        $region22: #{bert_forward.1} parent=11 // pred_check_branch
          %571 = sbr.rel (%p569) target = $region24
        $region23: #{bert_forward.1} parent=11 // pred_region
          _
        $region24: #{bert_forward.1} parent=11 // pred_fallthru
          _
        // Predicated region
        $region25: #{bert_forward.1} parent=11 // pred_check
          %p572 = pneg %p111
        $region26: #{bert_forward.1} parent=11 // pred_check_branch
          %574 = sbr.rel (%p572) target = $region28
        $region27: #{bert_forward.1} parent=11 // pred_region
          _
        $region28: #{bert_forward.1} parent=11 // pred_fallthru
          _
      $region12: #{bert_forward.1} parent=5 // pred_fallthru
        _
      %p575 = scmp.lt.s32.totalorder %s27, 2
      // Predicated region
      $region29: #{bert_forward.1} parent=5 // pred_check
        %p576 = pneg %p575
      $region30: #{bert_forward.1} parent=5 // pred_check_branch
        %578 = sbr.rel (%p576) target = $region32
      $region31: #{bert_forward.1} parent=5 // pred_region
        // Predicated region
        $region33: #{bert_forward.1} parent=31 // pred_check
          %p579 = pneg %p131
        $region34: #{bert_forward.1} parent=31 // pred_check_branch
          %581 = sbr.rel (%p579) target = $region36
        $region35: #{bert_forward.1} parent=31 // pred_region
          %p582 = scmp.lt.s32.totalorder %s27, 1
          %s583 = scalar_select %p582, %s27, 1
          %s584 = smul.addr %s583, 4
          %s585 = smul.addr %s584, 4
          %s586 = scalar_lea.vmem %s4, %s585
        $region36: #{bert_forward.1} parent=31 // pred_fallthru
          _
        // Predicated region
        $region37: #{bert_forward.1} parent=31 // pred_check
          %p587 = pneg %p157
        $region38: #{bert_forward.1} parent=31 // pred_check_branch
          %589 = sbr.rel (%p587) target = $region40
        $region39: #{bert_forward.1} parent=31 // pred_region
          %p590 = scmp.lt.s32.totalorder %s27, 1
          %s591 = scalar_select %p590, %s27, 1
          %s592 = scalar_lea.vmem %s5, %s591
        $region40: #{bert_forward.1} parent=31 // pred_fallthru
          _
        // Predicated region
        $region41: #{bert_forward.1} parent=31 // pred_check
          %p593 = pneg %p183
        $region42: #{bert_forward.1} parent=31 // pred_check_branch
          %595 = sbr.rel (%p593) target = $region44
        $region43: #{bert_forward.1} parent=31 // pred_region
          %p596 = scmp.lt.s32.totalorder %s27, 1
          %s597 = scalar_select %p596, %s27, 1
          %s598 = smul.addr %s597, 4
          %s599 = smul.addr %s598, 4
          %s600 = scalar_lea.vmem %s6, %s599
        $region44: #{bert_forward.1} parent=31 // pred_fallthru
          _
        // Predicated region
        $region45: #{bert_forward.1} parent=31 // pred_check
          %p601 = pneg %p209
        $region46: #{bert_forward.1} parent=31 // pred_check_branch
          %603 = sbr.rel (%p601) target = $region48
        $region47: #{bert_forward.1} parent=31 // pred_region
          %p604 = scmp.lt.s32.totalorder %s27, 1
          %s605 = scalar_select %p604, %s27, 1
          %s606 = scalar_lea.vmem %s7, %s605
        $region48: #{bert_forward.1} parent=31 // pred_fallthru
          _
        // Predicated region
        $region49: #{bert_forward.1} parent=31 // pred_check
          %p607 = pneg %p235
        $region50: #{bert_forward.1} parent=31 // pred_check_branch
          %609 = sbr.rel (%p607) target = $region52
        $region51: #{bert_forward.1} parent=31 // pred_region
          %p610 = scmp.lt.s32.totalorder %s27, 1
          %s611 = scalar_select %p610, %s27, 1
          %s612 = smul.addr %s611, 4
          %s613 = smul.addr %s612, 4
          %s614 = scalar_lea.vmem %s8, %s613
        $region52: #{bert_forward.1} parent=31 // pred_fallthru
          _
        // Predicated region
        $region53: #{bert_forward.1} parent=31 // pred_check
          %p615 = pneg %p261
        $region54: #{bert_forward.1} parent=31 // pred_check_branch
          %617 = sbr.rel (%p615) target = $region56
        $region55: #{bert_forward.1} parent=31 // pred_region
          %p618 = scmp.lt.s32.totalorder %s27, 1
          %s619 = scalar_select %p618, %s27, 1
          %s620 = scalar_lea.vmem %s9, %s619
        $region56: #{bert_forward.1} parent=31 // pred_fallthru
          _
        // Predicated region
        $region57: #{bert_forward.1} parent=31 // pred_check
          %p621 = pneg %p287
        $region58: #{bert_forward.1} parent=31 // pred_check_branch
          %623 = sbr.rel (%p621) target = $region60
        $region59: #{bert_forward.1} parent=31 // pred_region
          %p624 = scmp.lt.s32.totalorder %s27, 1
          %s625 = scalar_select %p624, %s27, 1
          %s626 = smul.addr %s625, 4
          %s627 = smul.addr %s626, 4
          %s628 = scalar_lea.vmem %s10, %s627
        $region60: #{bert_forward.1} parent=31 // pred_fallthru
          _
        // Predicated region
        $region61: #{bert_forward.1} parent=31 // pred_check
          %p629 = pneg %p313
        $region62: #{bert_forward.1} parent=31 // pred_check_branch
          %631 = sbr.rel (%p629) target = $region64
        $region63: #{bert_forward.1} parent=31 // pred_region
          %p632 = scmp.lt.s32.totalorder %s27, 1
          %s633 = scalar_select %p632, %s27, 1
          %s634 = scalar_lea.vmem %s11, %s633
        $region64: #{bert_forward.1} parent=31 // pred_fallthru
          _
        // Predicated region
        $region65: #{bert_forward.1} parent=31 // pred_check
          %p635 = pneg %p339
        $region66: #{bert_forward.1} parent=31 // pred_check_branch
          %637 = sbr.rel (%p635) target = $region68
        $region67: #{bert_forward.1} parent=31 // pred_region
          %p638 = scmp.lt.s32.totalorder %s27, 1
          %s639 = scalar_select %p638, %s27, 1
          %s640 = scalar_lea.vmem %s12, %s639
        $region68: #{bert_forward.1} parent=31 // pred_fallthru
          _
        // Predicated region
        $region69: #{bert_forward.1} parent=31 // pred_check
          %p641 = pneg %p365
        $region70: #{bert_forward.1} parent=31 // pred_check_branch
          %643 = sbr.rel (%p641) target = $region72
        $region71: #{bert_forward.1} parent=31 // pred_region
          %p644 = scmp.lt.s32.totalorder %s27, 1
          %s645 = scalar_select %p644, %s27, 1
          %s646 = scalar_lea.vmem %s13, %s645
        $region72: #{bert_forward.1} parent=31 // pred_fallthru
          _
        // Predicated region
        $region73: #{bert_forward.1} parent=31 // pred_check
          %p647 = pneg %p391
        $region74: #{bert_forward.1} parent=31 // pred_check_branch
          %649 = sbr.rel (%p647) target = $region76
        $region75: #{bert_forward.1} parent=31 // pred_region
          %p650 = scmp.lt.s32.totalorder %s27, 1
          %s651 = scalar_select %p650, %s27, 1
          %s652 = smul.addr %s651, 4
          %s653 = smul.addr %s652, 4
          %s654 = scalar_lea.vmem %s14, %s653
        $region76: #{bert_forward.1} parent=31 // pred_fallthru
          _
        // Predicated region
        $region77: #{bert_forward.1} parent=31 // pred_check
          %p655 = pneg %p417
        $region78: #{bert_forward.1} parent=31 // pred_check_branch
          %657 = sbr.rel (%p655) target = $region80
        $region79: #{bert_forward.1} parent=31 // pred_region
          %p658 = scmp.lt.s32.totalorder %s27, 1
          %s659 = scalar_select %p658, %s27, 1
          %s660 = scalar_lea.vmem %s15, %s659
        $region80: #{bert_forward.1} parent=31 // pred_fallthru
          _
        // Predicated region
        $region81: #{bert_forward.1} parent=31 // pred_check
          %p661 = pneg %p443
        $region82: #{bert_forward.1} parent=31 // pred_check_branch
          %663 = sbr.rel (%p661) target = $region84
        $region83: #{bert_forward.1} parent=31 // pred_region
          %p664 = scmp.lt.s32.totalorder %s27, 1
          %s665 = scalar_select %p664, %s27, 1
          %s666 = smul.addr %s665, 8
          %s667 = smul.addr %s666, 4
          %s668 = scalar_lea.vmem %s16, %s667
        $region84: #{bert_forward.1} parent=31 // pred_fallthru
          _
        // Predicated region
        $region85: #{bert_forward.1} parent=31 // pred_check
          %p669 = pneg %p469
        $region86: #{bert_forward.1} parent=31 // pred_check_branch
          %671 = sbr.rel (%p669) target = $region88
        $region87: #{bert_forward.1} parent=31 // pred_region
          %p672 = scmp.lt.s32.totalorder %s27, 1
          %s673 = scalar_select %p672, %s27, 1
          %s674 = scalar_lea.vmem %s17, %s673
        $region88: #{bert_forward.1} parent=31 // pred_fallthru
          _
        // Predicated region
        $region89: #{bert_forward.1} parent=31 // pred_check
          %p675 = pneg %p495
        $region90: #{bert_forward.1} parent=31 // pred_check_branch
          %677 = sbr.rel (%p675) target = $region92
        $region91: #{bert_forward.1} parent=31 // pred_region
          %p678 = scmp.lt.s32.totalorder %s27, 1
          %s679 = scalar_select %p678, %s27, 1
          %s680 = scalar_lea.vmem %s18, %s679
        $region92: #{bert_forward.1} parent=31 // pred_fallthru
          _
        // Predicated region
        $region93: #{bert_forward.1} parent=31 // pred_check
          %p681 = pneg %p521
        $region94: #{bert_forward.1} parent=31 // pred_check_branch
          %683 = sbr.rel (%p681) target = $region96
        $region95: #{bert_forward.1} parent=31 // pred_region
          %p684 = scmp.lt.s32.totalorder %s27, 1
          %s685 = scalar_select %p684, %s27, 1
          %s686 = scalar_lea.vmem %s19, %s685
        $region96: #{bert_forward.1} parent=31 // pred_fallthru
          _
      $region32: #{bert_forward.1} parent=5 // pred_fallthru
        _
      %p687 = scmp.le.s32.totalorder 1, %s27
      %p688 = scmp.lt.s32.totalorder %s27, 3
      %p689 = pnand %p687, %p688
      %p690 = pneg %p689
      // Predicated region
      $region97: #{bert_forward.1} parent=5 // pred_check
        _
      $region98: #{bert_forward.1} parent=5 // pred_check_branch
        %692 = sbr.rel (%p689) target = $region100
      $region99: #{bert_forward.1} parent=5 // pred_region
        %s693 = ssub.s32 %s27, 1
        %p694 = pneg %p48
        %p695 = pneg %p45
        %p696 = pneg %p69
        %p697 = pneg %p66
        %p698 = pneg %p90
        %p699 = pneg %p87
        %p700 = pneg %p111
        %p701 = pneg %p108
        %p702 = scmp.lt.s32.totalorder %s32, 1
        %s703 = scalar_select %p702, %s32, 1
        %s704 = smul.addr %s703, 4
        %s705 = smul.addr %s704, 4
        %s706 = scalar_lea.vmem %s4, %s705
        %p707 = pneg %p137
        %p708 = pneg %p134
        %p709 = scmp.lt.s32.totalorder %s32, 1
        %s710 = scalar_select %p709, %s32, 1
        %s711 = scalar_lea.vmem %s5, %s710
        %p712 = pneg %p163
        %p713 = pneg %p160
        %p714 = scmp.lt.s32.totalorder %s32, 1
        %s715 = scalar_select %p714, %s32, 1
        %s716 = smul.addr %s715, 4
        %s717 = smul.addr %s716, 4
        %s718 = scalar_lea.vmem %s6, %s717
        %p719 = pneg %p189
        %p720 = pneg %p186
        %p721 = scmp.lt.s32.totalorder %s32, 1
        %s722 = scalar_select %p721, %s32, 1
        %s723 = scalar_lea.vmem %s7, %s722
        %p724 = pneg %p215
        %p725 = pneg %p212
        %p726 = scmp.lt.s32.totalorder %s32, 1
        %s727 = scalar_select %p726, %s32, 1
        %s728 = smul.addr %s727, 4
        %s729 = smul.addr %s728, 4
        %s730 = scalar_lea.vmem %s8, %s729
        %p731 = pneg %p241
        %p732 = pneg %p238
        %p733 = scmp.lt.s32.totalorder %s32, 1
        %s734 = scalar_select %p733, %s32, 1
        %s735 = scalar_lea.vmem %s9, %s734
        %p736 = pneg %p267
        %p737 = pneg %p264
        %p738 = scmp.lt.s32.totalorder %s32, 1
        %s739 = scalar_select %p738, %s32, 1
        %s740 = smul.addr %s739, 4
        %s741 = smul.addr %s740, 4
        %s742 = scalar_lea.vmem %s10, %s741
        %p743 = pneg %p293
        %p744 = pneg %p290
        %p745 = scmp.lt.s32.totalorder %s32, 1
        %s746 = scalar_select %p745, %s32, 1
        %s747 = scalar_lea.vmem %s11, %s746
        %p748 = pneg %p319
        %p749 = pneg %p316
        %p750 = scmp.lt.s32.totalorder %s32, 1
        %s751 = scalar_select %p750, %s32, 1
        %s752 = scalar_lea.vmem %s12, %s751
        %p753 = pneg %p345
        %p754 = pneg %p342
        %p755 = scmp.lt.s32.totalorder %s32, 1
        %s756 = scalar_select %p755, %s32, 1
        %s757 = scalar_lea.vmem %s13, %s756
        %p758 = pneg %p371
        %p759 = pneg %p368
        %p760 = scmp.lt.s32.totalorder %s32, 1
        %s761 = scalar_select %p760, %s32, 1
        %s762 = smul.addr %s761, 4
        %s763 = smul.addr %s762, 4
        %s764 = scalar_lea.vmem %s14, %s763
        %p765 = pneg %p397
        %p766 = pneg %p394
        %p767 = scmp.lt.s32.totalorder %s32, 1
        %s768 = scalar_select %p767, %s32, 1
        %s769 = scalar_lea.vmem %s15, %s768
        %p770 = pneg %p423
        %p771 = pneg %p420
        %p772 = scmp.lt.s32.totalorder %s32, 1
        %s773 = scalar_select %p772, %s32, 1
        %s774 = smul.addr %s773, 8
        %s775 = smul.addr %s774, 4
        %s776 = scalar_lea.vmem %s16, %s775
        %p777 = pneg %p449
        %p778 = pneg %p446
        %p779 = scmp.lt.s32.totalorder %s32, 1
        %s780 = scalar_select %p779, %s32, 1
        %s781 = scalar_lea.vmem %s17, %s780
        %p782 = pneg %p475
        %p783 = pneg %p472
        %p784 = scmp.lt.s32.totalorder %s32, 1
        %s785 = scalar_select %p784, %s32, 1
        %s786 = scalar_lea.vmem %s18, %s785
        %p787 = pneg %p501
        %p788 = pneg %p498
        %p789 = scmp.lt.s32.totalorder %s32, 1
        %s790 = scalar_select %p789, %s32, 1
        %s791 = scalar_lea.vmem %s19, %s790
        %p792 = pneg %p527
        %p793 = pneg %p524
        %p794 = pneg %p548
        %p795 = pneg %p545
        %p796 = scmp.lt.s32.totalorder %s32, 1
        %s797 = scalar_select %p796, %s32, 1
        %s798 = smul.addr %s797, 4
        %s799 = smul.addr %s798, 4
        %s800 = scalar_lea.vmem %s4, %s799
        %p801 = scmp.lt.s32.totalorder %s32, 1
        %s802 = scalar_select %p801, %s32, 1
        %s803 = scalar_lea.vmem %s5, %s802
        %p804 = scmp.lt.s32.totalorder %s32, 1
        %s805 = scalar_select %p804, %s32, 1
        %s806 = smul.addr %s805, 4
        %s807 = smul.addr %s806, 4
        %s808 = scalar_lea.vmem %s6, %s807
        %p809 = scmp.lt.s32.totalorder %s32, 1
        %s810 = scalar_select %p809, %s32, 1
        %s811 = scalar_lea.vmem %s7, %s810
        %p812 = scmp.lt.s32.totalorder %s32, 1
        %s813 = scalar_select %p812, %s32, 1
        %s814 = smul.addr %s813, 4
        %s815 = smul.addr %s814, 4
        %s816 = scalar_lea.vmem %s8, %s815
        %p817 = scmp.lt.s32.totalorder %s32, 1
        %s818 = scalar_select %p817, %s32, 1
        %s819 = scalar_lea.vmem %s9, %s818
        %p820 = scmp.lt.s32.totalorder %s32, 1
        %s821 = scalar_select %p820, %s32, 1
        %s822 = smul.addr %s821, 4
        %s823 = smul.addr %s822, 4
        %s824 = scalar_lea.vmem %s10, %s823
        %p825 = scmp.lt.s32.totalorder %s32, 1
        %s826 = scalar_select %p825, %s32, 1
        %s827 = scalar_lea.vmem %s11, %s826
        %p828 = scmp.lt.s32.totalorder %s32, 1
        %s829 = scalar_select %p828, %s32, 1
        %s830 = scalar_lea.vmem %s12, %s829
        %p831 = scmp.lt.s32.totalorder %s32, 1
        %s832 = scalar_select %p831, %s32, 1
        %s833 = scalar_lea.vmem %s13, %s832
        %p834 = scmp.lt.s32.totalorder %s32, 1
        %s835 = scalar_select %p834, %s32, 1
        %s836 = smul.addr %s835, 4
        %s837 = smul.addr %s836, 4
        %s838 = scalar_lea.vmem %s14, %s837
        %p839 = scmp.lt.s32.totalorder %s32, 1
        %s840 = scalar_select %p839, %s32, 1
        %s841 = scalar_lea.vmem %s15, %s840
        %p842 = scmp.lt.s32.totalorder %s32, 1
        %s843 = scalar_select %p842, %s32, 1
        %s844 = smul.addr %s843, 8
        %s845 = smul.addr %s844, 4
        %s846 = scalar_lea.vmem %s16, %s845
        %p847 = scmp.lt.s32.totalorder %s32, 1
        %s848 = scalar_select %p847, %s32, 1
        %s849 = scalar_lea.vmem %s17, %s848
        %p850 = scmp.lt.s32.totalorder %s32, 1
        %s851 = scalar_select %p850, %s32, 1
        %s852 = scalar_lea.vmem %s18, %s851
        %p853 = scmp.lt.s32.totalorder %s32, 1
        %s854 = scalar_select %p853, %s32, 1
        %s855 = scalar_lea.vmem %s19, %s854
        %p857 = scmp.eq.s32.totalorder %s32, 0
        // Predicated region
        $region101: #{bert_forward.1} parent=99 // pred_check
          %p858 = pneg %p857
        $region102: #{bert_forward.1} parent=99 // pred_check_branch
          %860 = sbr.rel (%p858) target = $region104
        $region103: #{bert_forward.1} parent=99 // pred_region
          %v861 = vld [vmem:[%s0] sm:$0xff]
          %v862 = vld [vmem:[%s0 + $0x8] sm:$0xff]
          %v863 = vld [vmem:[%s2] sm:$0x1]
          %v864 = vld [vmem:[%s3] sm:$0x1]
          %vm865 = vcmask 261120
          %v866 = vsel %vm865, %v861, 0.0
          %867 = vadd.xlane.f32.xlu0 %v866
          %v868 = vpop.xlane.xlu0 %867
          %v869 = vsel %vm865, %v862, 0.0
          %870 = vadd.xlane.f32.xlu0 %v869
          %v871 = vpop.xlane.xlu0 %870
          %v872 = vrcp.pop 32.0
          %v873 = vmul.f32 %v868, %v872
          %v874 = vmul.f32 %v871, %v872
          %v875 = vsub.f32 %v861, %v873
          %v876 = vsub.f32 %v862, %v874
          %v877 = vmul.f32 %v875, %v875
          %v878 = vmul.f32 %v876, %v876
          %v879 = vsel %vm865, %v877, 0.0
          %880 = vadd.xlane.f32.xlu0 %v879
          %v881 = vpop.xlane.xlu0 %880
          %v882 = vsel %vm865, %v878, 0.0
          %883 = vadd.xlane.f32.xlu0 %v882
          %v884 = vpop.xlane.xlu0 %883
          %v885 = vmul.f32 %v881, %v872
          %v886 = vmul.f32 %v884, %v872
          %v887 = vadd.f32 %v885, 1e-12
          %v888 = vadd.f32 %v886, 1e-12
          %v889 = vrsqrt.pop %v887
          %v890 = vrsqrt.pop %v888
          %v891 = vmul.f32 %v875, %v889
          %v892 = vmul.f32 %v876, %v890
          %v894 = vlaneseq
          %v895 = vshrl.u32 %v894, 7
          %v896 = vsub.s32 0, %v895
          %v897 = vrot.slane %v863, %v896
          %v899 = vmul.f32 %v891, %v897
          %v900 = vmul.f32 %v892, %v897
          %v902 = vlaneseq
          %v903 = vshrl.u32 %v902, 7
          %v904 = vsub.s32 0, %v903
          %v905 = vrot.slane %v864, %v904
          %v907 = vadd.f32 %v899, %v905
          %v908 = vadd.f32 %v900, %v905
          %909 = vst.msk [vmem:[#allocation2] sm:$0xff] %vm865, %v907
          %910 = vst.msk [vmem:[#allocation2 + $0x8] sm:$0xff] %vm865, %v908
        $region104: #{bert_forward.1} parent=99 // pred_fallthru
          _
        %v911 = vld [vmem:[#allocation2] sm:$0xff]
        %v912 = vld [vmem:[#allocation2 + $0x8] sm:$0xff]
        %v913 = vpack.c.bf16 %v912, %v911
        %v914 = vld [vmem:[%s1] sm:$0xff]
        %v915 = vld [vmem:[%s1 + $0x8] sm:$0xff]
        %v916 = vld [vmem:[%s800] sm:$0xf]
        %v917 = vld [vmem:[%s800 + $0x4] sm:$0xf]
        %v918 = vld [vmem:[%s800 + $0x8] sm:$0xf]
        %v919 = vld [vmem:[%s800 + $0xc] sm:$0xf]
        %v920 = vld [vmem:[%s803] sm:$0x1]
        %v922 = vlaneseq
        %v923 = vshrl.u32 %v922, 7
        %v924 = vsub.s32 0, %v923
        %v925 = vrot.slane %v920, %v924
        %v931 = vunpack.c.l.b16 %v916
        %v932 = vunpack.c.l.b16 %v917
        %v933 = vunpack.c.l.b16 %v918
        %v934 = vunpack.c.l.b16 %v919
        %v935 = vpack.c.b16 %v932, %v931
        %v936 = vpack.c.b16 %v934, %v933
        %vm939 = vcmask 261120
        %v941 = vsel %vm939, %v913, 0
        %943 = vmatprep.subr.bf16.mxu0 0
        %944 = vmatpush1.bf16.msra.mxu0 %v935
        %945 = vmatprep.subr.bf16.mxu0 0
        %946 = vmatpush1.bf16.msra.mxu0 %v936
        %947 = vmatprep.subr.bf16.mxu0 0
        %948 = vmatpush1.bf16.msra.mxu0 0
        %949 = vmatprep.subr.bf16.mxu0 0
        %950 = vmatpush1.bf16.msra.mxu0 0
        %951 = vmatprep.subr.bf16.mxu0 0
        %952 = vmatpush1.bf16.msra.mxu0 0
        %953 = vmatprep.subr.bf16.mxu0 0
        %954 = vmatpush1.bf16.msra.mxu0 0
        %955 = vmatprep.subr.bf16.mxu0 0
        %956 = vmatpush1.bf16.msra.mxu0 0
        %957 = vmatprep.subr.bf16.mxu0 0
        %958 = vmatpush1.bf16.msra.mxu0 0
        %959 = vmatprep.subr.bf16.mxu0 0
        %960 = vmatpush1.bf16.msra.mxu0 0
        %961 = vmatprep.subr.bf16.mxu0 0
        %962 = vmatpush1.bf16.msra.mxu0 0
        %963 = vmatprep.subr.bf16.mxu0 0
        %964 = vmatpush1.bf16.msra.mxu0 0
        %965 = vmatprep.subr.bf16.mxu0 0
        %966 = vmatpush1.bf16.msra.mxu0 0
        %967 = vmatprep.subr.bf16.mxu0 0
        %968 = vmatpush1.bf16.msra.mxu0 0
        %969 = vmatprep.subr.bf16.mxu0 0
        %970 = vmatpush1.bf16.msra.mxu0 0
        %971 = vmatprep.subr.bf16.mxu0 0
        %972 = vmatpush1.bf16.msra.mxu0 0
        %973 = vmatprep.subr.bf16.mxu0 0
        %974 = vmatpush1.bf16.msra.mxu0 0
        %975 = vmatprep.mubr.bf16.mxu0 0
        %976 = vmatmul.mubr.bf16.gmra.mrb[0].mxu0 %v941
        %v977 = vpop.f32.mrb[0].mxu0
        %v978 = vadd.f32 %v925, %v977
        %v979 = vpop.f32.mrb[0].mxu0
        %v980 = vpop.f32.mrb[0].mxu0
        %v981 = vadd.f32 %v925, %v980
        %v982 = vpop.f32.mrb[0].mxu0
        %983 = vdwg.mxu0
        %v984 = vmul.f32 %v978, 0.35355338
        %v985 = vmul.f32 %v981, 0.35355338
        %v986 = vld [vmem:[%s808] sm:$0xf]
        %v987 = vld [vmem:[%s808 + $0x4] sm:$0xf]
        %v988 = vld [vmem:[%s808 + $0x8] sm:$0xf]
        %v989 = vld [vmem:[%s808 + $0xc] sm:$0xf]
        %v990 = vld [vmem:[%s811] sm:$0x1]
        %v992 = vlaneseq
        %v993 = vshrl.u32 %v992, 7
        %v994 = vsub.s32 0, %v993
        %v995 = vrot.slane %v990, %v994
        %v1001 = vunpack.c.l.b16 %v986
        %v1002 = vunpack.c.l.b16 %v987
        %v1003 = vunpack.c.l.b16 %v988
        %v1004 = vunpack.c.l.b16 %v989
        %v1005 = vpack.c.b16 %v1002, %v1001
        %v1006 = vpack.c.b16 %v1004, %v1003
        %1009 = vmatprep.subr.bf16.mxu0 0
        %1010 = vmatpush1.bf16.msra.mxu0 %v1005
        %1011 = vmatprep.subr.bf16.mxu0 0
        %1012 = vmatpush1.bf16.msra.mxu0 %v1006
        %1013 = vmatprep.subr.bf16.mxu0 0
        %1014 = vmatpush1.bf16.msra.mxu0 0
        %1015 = vmatprep.subr.bf16.mxu0 0
        %1016 = vmatpush1.bf16.msra.mxu0 0
        %1017 = vmatprep.subr.bf16.mxu0 0
        %1018 = vmatpush1.bf16.msra.mxu0 0
        %1019 = vmatprep.subr.bf16.mxu0 0
        %1020 = vmatpush1.bf16.msra.mxu0 0
        %1021 = vmatprep.subr.bf16.mxu0 0
        %1022 = vmatpush1.bf16.msra.mxu0 0
        %1023 = vmatprep.subr.bf16.mxu0 0
        %1024 = vmatpush1.bf16.msra.mxu0 0
        %1025 = vmatprep.subr.bf16.mxu0 0
        %1026 = vmatpush1.bf16.msra.mxu0 0
        %1027 = vmatprep.subr.bf16.mxu0 0
        %1028 = vmatpush1.bf16.msra.mxu0 0
        %1029 = vmatprep.subr.bf16.mxu0 0
        %1030 = vmatpush1.bf16.msra.mxu0 0
        %1031 = vmatprep.subr.bf16.mxu0 0
        %1032 = vmatpush1.bf16.msra.mxu0 0
        %1033 = vmatprep.subr.bf16.mxu0 0
        %1034 = vmatpush1.bf16.msra.mxu0 0
        %1035 = vmatprep.subr.bf16.mxu0 0
        %1036 = vmatpush1.bf16.msra.mxu0 0
        %1037 = vmatprep.subr.bf16.mxu0 0
        %1038 = vmatpush1.bf16.msra.mxu0 0
        %1039 = vmatprep.subr.bf16.mxu0 0
        %1040 = vmatpush1.bf16.msra.mxu0 0
        %1041 = vmatprep.mubr.bf16.mxu0 0
        %1042 = vmatmul.mubr.bf16.gmra.mrb[0].mxu0 %v941
        %v1043 = vpop.f32.mrb[0].mxu0
        %v1044 = vadd.f32 %v995, %v1043
        %v1045 = vpop.f32.mrb[0].mxu0
        %v1046 = vpop.f32.mrb[0].mxu0
        %v1047 = vadd.f32 %v995, %v1046
        %v1048 = vpop.f32.mrb[0].mxu0
        %1049 = vdwg.mxu0
        %v1050 = vld [vmem:[%s816] sm:$0xf]
        %v1051 = vld [vmem:[%s816 + $0x4] sm:$0xf]
        %v1052 = vld [vmem:[%s816 + $0x8] sm:$0xf]
        %v1053 = vld [vmem:[%s816 + $0xc] sm:$0xf]
        %v1054 = vld [vmem:[%s819] sm:$0x1]
        %v1056 = vlaneseq
        %v1057 = vshrl.u32 %v1056, 7
        %v1058 = vsub.s32 0, %v1057
        %v1059 = vrot.slane %v1054, %v1058
        %v1065 = vunpack.c.l.b16 %v1050
        %v1066 = vunpack.c.l.b16 %v1051
        %v1067 = vunpack.c.l.b16 %v1052
        %v1068 = vunpack.c.l.b16 %v1053
        %v1069 = vpack.c.b16 %v1066, %v1065
        %v1070 = vpack.c.b16 %v1068, %v1067
        %1073 = vmatprep.subr.bf16.mxu0 0
        %1074 = vmatpush1.bf16.msra.mxu0 %v1069
        %1075 = vmatprep.subr.bf16.mxu0 0
        %1076 = vmatpush1.bf16.msra.mxu0 %v1070
        %1077 = vmatprep.subr.bf16.mxu0 0
        %1078 = vmatpush1.bf16.msra.mxu0 0
        %1079 = vmatprep.subr.bf16.mxu0 0
        %1080 = vmatpush1.bf16.msra.mxu0 0
        %1081 = vmatprep.subr.bf16.mxu0 0
        %1082 = vmatpush1.bf16.msra.mxu0 0
        %1083 = vmatprep.subr.bf16.mxu0 0
        %1084 = vmatpush1.bf16.msra.mxu0 0
        %1085 = vmatprep.subr.bf16.mxu0 0
        %1086 = vmatpush1.bf16.msra.mxu0 0
        %1087 = vmatprep.subr.bf16.mxu0 0
        %1088 = vmatpush1.bf16.msra.mxu0 0
        %1089 = vmatprep.subr.bf16.mxu0 0
        %1090 = vmatpush1.bf16.msra.mxu0 0
        %1091 = vmatprep.subr.bf16.mxu0 0
        %1092 = vmatpush1.bf16.msra.mxu0 0
        %1093 = vmatprep.subr.bf16.mxu0 0
        %1094 = vmatpush1.bf16.msra.mxu0 0
        %1095 = vmatprep.subr.bf16.mxu0 0
        %1096 = vmatpush1.bf16.msra.mxu0 0
        %1097 = vmatprep.subr.bf16.mxu0 0
        %1098 = vmatpush1.bf16.msra.mxu0 0
        %1099 = vmatprep.subr.bf16.mxu0 0
        %1100 = vmatpush1.bf16.msra.mxu0 0
        %1101 = vmatprep.subr.bf16.mxu0 0
        %1102 = vmatpush1.bf16.msra.mxu0 0
        %1103 = vmatprep.subr.bf16.mxu0 0
        %1104 = vmatpush1.bf16.msra.mxu0 0
        %1105 = vmatprep.mubr.bf16.mxu0 0
        %1106 = vmatmul.mubr.bf16.gmra.mrb[0].mxu0 %v941
        %v1107 = vpop.f32.mrb[0].mxu0
        %v1108 = vadd.f32 %v1059, %v1107
        %v1109 = vpop.f32.mrb[0].mxu0
        %v1110 = vpop.f32.mrb[0].mxu0
        %v1111 = vadd.f32 %v1059, %v1110
        %v1112 = vpop.f32.mrb[0].mxu0
        %1113 = vdwg.mxu0
        %v1114 = vpack.c.bf16 %v985, %v984
        %v1115 = vpack.c.bf16 %v1047, %v1044
        %v1116 = vpack.c.bf16 %v1111, %v1108
        %vm1117 = vcmask 64512
        %v1119 = vsel %vm1117, %v1114, 0
        %v1122 = vsel %vm1117, %v1115, 0
        %1124 = vmatprep.subr.bf16.mxu0 0
        %1125 = vmatpush1.bf16.xpose.msra.mxu0 %v1122
        %1126 = vmatprep.subr.bf16.mxu0 0
        %1127 = vmatpush1.bf16.xpose.msra.mxu0 0
        %1128 = vmatprep.subr.bf16.mxu0 0
        %1129 = vmatpush1.bf16.xpose.msra.mxu0 0
        %1130 = vmatprep.subr.bf16.mxu0 0
        %1131 = vmatpush1.bf16.xpose.msra.mxu0 0
        %1132 = vmatprep.subr.bf16.mxu0 0
        %1133 = vmatpush1.bf16.xpose.msra.mxu0 0
        %1134 = vmatprep.subr.bf16.mxu0 0
        %1135 = vmatpush1.bf16.xpose.msra.mxu0 0
        %1136 = vmatprep.subr.bf16.mxu0 0
        %1137 = vmatpush1.bf16.xpose.msra.mxu0 0
        %1138 = vmatprep.subr.bf16.mxu0 0
        %1139 = vmatpush1.bf16.xpose.msra.mxu0 0
        %1140 = vmatprep.subr.bf16.mxu0 0
        %1141 = vmatpush1.bf16.xpose.msra.mxu0 0
        %1142 = vmatprep.subr.bf16.mxu0 0
        %1143 = vmatpush1.bf16.xpose.msra.mxu0 0
        %1144 = vmatprep.subr.bf16.mxu0 0
        %1145 = vmatpush1.bf16.xpose.msra.mxu0 0
        %1146 = vmatprep.subr.bf16.mxu0 0
        %1147 = vmatpush1.bf16.xpose.msra.mxu0 0
        %1148 = vmatprep.subr.bf16.mxu0 0
        %1149 = vmatpush1.bf16.xpose.msra.mxu0 0
        %1150 = vmatprep.subr.bf16.mxu0 0
        %1151 = vmatpush1.bf16.xpose.msra.mxu0 0
        %1152 = vmatprep.subr.bf16.mxu0 0
        %1153 = vmatpush1.bf16.xpose.msra.mxu0 0
        %1154 = vmatprep.subr.bf16.mxu0 0
        %1155 = vmatpush1.bf16.xpose.msra.mxu0 0
        %1156 = vmatprep.mubr.bf16.mxu0 0
        %1157 = vmatmul.mubr.bf16.gmra.mrb[0].mxu0 %v1119
        %v1158 = vpop.f32.mrb[0].mxu0
        %v1159 = vadd.f32 %v914, %v1158
        %v1160 = vpop.f32.mrb[0].mxu0
        %v1161 = vpop.f32.mrb[0].mxu0
        %v1162 = vadd.f32 %v915, %v1161
        %v1163 = vpop.f32.mrb[0].mxu0
        %1164 = vdwg.mxu0
        %vm1165 = vcmask 130048
        %v1166 = vsel %vm1165, %v1159, -inf
        %1167 = vmax.xlane.f32.xlu0 %v1166
        %v1168 = vpop.xlane.xlu0 %1167
        %v1169 = vsel %vm1165, %v1162, -inf
        %1170 = vmax.xlane.f32.xlu0 %v1169
        %v1171 = vpop.xlane.xlu0 %1170
        %v1172 = vsub.f32 %v1159, %v1168
        %v1173 = vsub.f32 %v1162, %v1171
        %v1174 = vmul.f32 %v1172, 1.442695
        %v1175 = vpow.pop %v1174
        %v1176 = vmul.f32 %v1173, 1.442695
        %v1177 = vpow.pop %v1176
        %v1178 = vsel %vm1165, %v1175, 0.0
        %1179 = vadd.xlane.f32.xlu0 %v1178
        %v1180 = vpop.xlane.xlu0 %1179
        %v1181 = vsel %vm1165, %v1177, 0.0
        %1182 = vadd.xlane.f32.xlu0 %v1181
        %v1183 = vpop.xlane.xlu0 %1182
        %v1184 = vrcp.pop %v1180
        %v1185 = vmul.f32 %v1175, %v1184
        %v1186 = vrcp.pop %v1183
        %v1187 = vmul.f32 %v1177, %v1186
        %v1188 = vpack.c.bf16 %v1187, %v1185
        %v1190 = vsel %vm1165, %v1188, 0
        %1192 = vmatprep.subr.bf16.mxu0 0
        %1193 = vmatpush1.bf16.msra.mxu0 %v1116
        %1194 = vmatprep.subr.bf16.mxu0 0
        %1195 = vmatpush1.bf16.msra.mxu0 0
        %1196 = vmatprep.subr.bf16.mxu0 0
        %1197 = vmatpush1.bf16.msra.mxu0 0
        %1198 = vmatprep.subr.bf16.mxu0 0
        %1199 = vmatpush1.bf16.msra.mxu0 0
        %1200 = vmatprep.subr.bf16.mxu0 0
        %1201 = vmatpush1.bf16.msra.mxu0 0
        %1202 = vmatprep.subr.bf16.mxu0 0
        %1203 = vmatpush1.bf16.msra.mxu0 0
        %1204 = vmatprep.subr.bf16.mxu0 0
        %1205 = vmatpush1.bf16.msra.mxu0 0
        %1206 = vmatprep.subr.bf16.mxu0 0
        %1207 = vmatpush1.bf16.msra.mxu0 0
        %1208 = vmatprep.subr.bf16.mxu0 0
        %1209 = vmatpush1.bf16.msra.mxu0 0
        %1210 = vmatprep.subr.bf16.mxu0 0
        %1211 = vmatpush1.bf16.msra.mxu0 0
        %1212 = vmatprep.subr.bf16.mxu0 0
        %1213 = vmatpush1.bf16.msra.mxu0 0
        %1214 = vmatprep.subr.bf16.mxu0 0
        %1215 = vmatpush1.bf16.msra.mxu0 0
        %1216 = vmatprep.subr.bf16.mxu0 0
        %1217 = vmatpush1.bf16.msra.mxu0 0
        %1218 = vmatprep.subr.bf16.mxu0 0
        %1219 = vmatpush1.bf16.msra.mxu0 0
        %1220 = vmatprep.subr.bf16.mxu0 0
        %1221 = vmatpush1.bf16.msra.mxu0 0
        %1222 = vmatprep.subr.bf16.mxu0 0
        %1223 = vmatpush1.bf16.msra.mxu0 0
        %1224 = vmatprep.mubr.bf16.mxu0 0
        %1225 = vmatmul.mubr.bf16.gmra.mrb[0].mxu0 %v1190
        %v1226 = vpop.f32.mrb[0].mxu0
        %v1227 = vadd.f32 0.0, %v1226
        %v1228 = vpop.f32.mrb[0].mxu0
        %v1229 = vpop.f32.mrb[0].mxu0
        %v1230 = vadd.f32 0.0, %v1229
        %v1231 = vpop.f32.mrb[0].mxu0
        %1232 = vdwg.mxu0
        %1234 = vrot.lane.b32.xlu0 %v1114, 120
        %v1235 = vpop.permute.xlu0 %1234
        %1237 = vrot.lane.b32.xlu0 %v1115, 120
        %v1238 = vpop.permute.xlu0 %1237
        %v1240 = vsel %vm1117, %v1235, 0
        %v1243 = vsel %vm1117, %v1238, 0
        %1245 = vmatprep.subr.bf16.mxu0 0
        %1246 = vmatpush1.bf16.xpose.msra.mxu0 %v1243
        %1247 = vmatprep.subr.bf16.mxu0 0
        %1248 = vmatpush1.bf16.xpose.msra.mxu0 0
        %1249 = vmatprep.subr.bf16.mxu0 0
        %1250 = vmatpush1.bf16.xpose.msra.mxu0 0
        %1251 = vmatprep.subr.bf16.mxu0 0
        %1252 = vmatpush1.bf16.xpose.msra.mxu0 0
        %1253 = vmatprep.subr.bf16.mxu0 0
        %1254 = vmatpush1.bf16.xpose.msra.mxu0 0
        %1255 = vmatprep.subr.bf16.mxu0 0
        %1256 = vmatpush1.bf16.xpose.msra.mxu0 0
        %1257 = vmatprep.subr.bf16.mxu0 0
        %1258 = vmatpush1.bf16.xpose.msra.mxu0 0
        %1259 = vmatprep.subr.bf16.mxu0 0
        %1260 = vmatpush1.bf16.xpose.msra.mxu0 0
        %1261 = vmatprep.subr.bf16.mxu0 0
        %1262 = vmatpush1.bf16.xpose.msra.mxu0 0
        %1263 = vmatprep.subr.bf16.mxu0 0
        %1264 = vmatpush1.bf16.xpose.msra.mxu0 0
        %1265 = vmatprep.subr.bf16.mxu0 0
        %1266 = vmatpush1.bf16.xpose.msra.mxu0 0
        %1267 = vmatprep.subr.bf16.mxu0 0
        %1268 = vmatpush1.bf16.xpose.msra.mxu0 0
        %1269 = vmatprep.subr.bf16.mxu0 0
        %1270 = vmatpush1.bf16.xpose.msra.mxu0 0
        %1271 = vmatprep.subr.bf16.mxu0 0
        %1272 = vmatpush1.bf16.xpose.msra.mxu0 0
        %1273 = vmatprep.subr.bf16.mxu0 0
        %1274 = vmatpush1.bf16.xpose.msra.mxu0 0
        %1275 = vmatprep.subr.bf16.mxu0 0
        %1276 = vmatpush1.bf16.xpose.msra.mxu0 0
        %1277 = vmatprep.mubr.bf16.mxu0 0
        %1278 = vmatmul.mubr.bf16.gmra.mrb[0].mxu0 %v1240
        %v1279 = vpop.f32.mrb[0].mxu0
        %v1280 = vadd.f32 %v914, %v1279
        %v1281 = vpop.f32.mrb[0].mxu0
        %v1282 = vpop.f32.mrb[0].mxu0
        %v1283 = vadd.f32 %v915, %v1282
        %v1284 = vpop.f32.mrb[0].mxu0
        %1285 = vdwg.mxu0
        %v1286 = vsel %vm1165, %v1280, -inf
        %1287 = vmax.xlane.f32.xlu0 %v1286
        %v1288 = vpop.xlane.xlu0 %1287
        %v1289 = vsel %vm1165, %v1283, -inf
        %1290 = vmax.xlane.f32.xlu0 %v1289
        %v1291 = vpop.xlane.xlu0 %1290
        %v1292 = vsub.f32 %v1280, %v1288
        %v1293 = vsub.f32 %v1283, %v1291
        %v1294 = vmul.f32 %v1292, 1.442695
        %v1295 = vpow.pop %v1294
        %v1296 = vmul.f32 %v1293, 1.442695
        %v1297 = vpow.pop %v1296
        %v1298 = vsel %vm1165, %v1295, 0.0
        %1299 = vadd.xlane.f32.xlu0 %v1298
        %v1300 = vpop.xlane.xlu0 %1299
        %v1301 = vsel %vm1165, %v1297, 0.0
        %1302 = vadd.xlane.f32.xlu0 %v1301
        %v1303 = vpop.xlane.xlu0 %1302
        %v1304 = vrcp.pop %v1300
        %v1305 = vmul.f32 %v1295, %v1304
        %v1306 = vrcp.pop %v1303
        %v1307 = vmul.f32 %v1297, %v1306
        %v1308 = vpack.c.bf16 %v1307, %v1305
        %1310 = vrot.lane.b32.xlu0 %v1116, 120
        %v1311 = vpop.permute.xlu0 %1310
        %v1314 = vsel %vm1165, %v1308, 0
        %1316 = vmatprep.subr.bf16.mxu0 0
        %1317 = vmatpush1.bf16.msra.mxu0 %v1311
        %1318 = vmatprep.subr.bf16.mxu0 0
        %1319 = vmatpush1.bf16.msra.mxu0 0
        %1320 = vmatprep.subr.bf16.mxu0 0
        %1321 = vmatpush1.bf16.msra.mxu0 0
        %1322 = vmatprep.subr.bf16.mxu0 0
        %1323 = vmatpush1.bf16.msra.mxu0 0
        %1324 = vmatprep.subr.bf16.mxu0 0
        %1325 = vmatpush1.bf16.msra.mxu0 0
        %1326 = vmatprep.subr.bf16.mxu0 0
        %1327 = vmatpush1.bf16.msra.mxu0 0
        %1328 = vmatprep.subr.bf16.mxu0 0
        %1329 = vmatpush1.bf16.msra.mxu0 0
        %1330 = vmatprep.subr.bf16.mxu0 0
        %1331 = vmatpush1.bf16.msra.mxu0 0
        %1332 = vmatprep.subr.bf16.mxu0 0
        %1333 = vmatpush1.bf16.msra.mxu0 0
        %1334 = vmatprep.subr.bf16.mxu0 0
        %1335 = vmatpush1.bf16.msra.mxu0 0
        %1336 = vmatprep.subr.bf16.mxu0 0
        %1337 = vmatpush1.bf16.msra.mxu0 0
        %1338 = vmatprep.subr.bf16.mxu0 0
        %1339 = vmatpush1.bf16.msra.mxu0 0
        %1340 = vmatprep.subr.bf16.mxu0 0
        %1341 = vmatpush1.bf16.msra.mxu0 0
        %1342 = vmatprep.subr.bf16.mxu0 0
        %1343 = vmatpush1.bf16.msra.mxu0 0
        %1344 = vmatprep.subr.bf16.mxu0 0
        %1345 = vmatpush1.bf16.msra.mxu0 0
        %1346 = vmatprep.subr.bf16.mxu0 0
        %1347 = vmatpush1.bf16.msra.mxu0 0
        %1348 = vmatprep.mubr.bf16.mxu0 0
        %1349 = vmatmul.mubr.bf16.gmra.mrb[0].mxu0 %v1314
        %v1350 = vpop.f32.mrb[0].mxu0
        %v1351 = vadd.f32 0.0, %v1350
        %v1352 = vpop.f32.mrb[0].mxu0
        %v1353 = vpop.f32.mrb[0].mxu0
        %v1354 = vadd.f32 0.0, %v1353
        %v1355 = vpop.f32.mrb[0].mxu0
        %1356 = vdwg.mxu0
        %1357 = vrot.lane.b32.xlu0 %v1114, 112
        %v1358 = vpop.permute.xlu0 %1357
        %1359 = vrot.lane.b32.xlu0 %v1115, 112
        %v1360 = vpop.permute.xlu0 %1359
        %v1362 = vsel %vm1117, %v1358, 0
        %v1365 = vsel %vm1117, %v1360, 0
        %1367 = vmatprep.subr.bf16.mxu0 0
        %1368 = vmatpush1.bf16.xpose.msra.mxu0 %v1365
        %1369 = vmatprep.subr.bf16.mxu0 0
        %1370 = vmatpush1.bf16.xpose.msra.mxu0 0
        %1371 = vmatprep.subr.bf16.mxu0 0
        %1372 = vmatpush1.bf16.xpose.msra.mxu0 0
        %1373 = vmatprep.subr.bf16.mxu0 0
        %1374 = vmatpush1.bf16.xpose.msra.mxu0 0
        %1375 = vmatprep.subr.bf16.mxu0 0
        %1376 = vmatpush1.bf16.xpose.msra.mxu0 0
        %1377 = vmatprep.subr.bf16.mxu0 0
        %1378 = vmatpush1.bf16.xpose.msra.mxu0 0
        %1379 = vmatprep.subr.bf16.mxu0 0
        %1380 = vmatpush1.bf16.xpose.msra.mxu0 0
        %1381 = vmatprep.subr.bf16.mxu0 0
        %1382 = vmatpush1.bf16.xpose.msra.mxu0 0
        %1383 = vmatprep.subr.bf16.mxu0 0
        %1384 = vmatpush1.bf16.xpose.msra.mxu0 0
        %1385 = vmatprep.subr.bf16.mxu0 0
        %1386 = vmatpush1.bf16.xpose.msra.mxu0 0
        %1387 = vmatprep.subr.bf16.mxu0 0
        %1388 = vmatpush1.bf16.xpose.msra.mxu0 0
        %1389 = vmatprep.subr.bf16.mxu0 0
        %1390 = vmatpush1.bf16.xpose.msra.mxu0 0
        %1391 = vmatprep.subr.bf16.mxu0 0
        %1392 = vmatpush1.bf16.xpose.msra.mxu0 0
        %1393 = vmatprep.subr.bf16.mxu0 0
        %1394 = vmatpush1.bf16.xpose.msra.mxu0 0
        %1395 = vmatprep.subr.bf16.mxu0 0
        %1396 = vmatpush1.bf16.xpose.msra.mxu0 0
        %1397 = vmatprep.subr.bf16.mxu0 0
        %1398 = vmatpush1.bf16.xpose.msra.mxu0 0
        %1399 = vmatprep.mubr.bf16.mxu0 0
        %1400 = vmatmul.mubr.bf16.gmra.mrb[0].mxu0 %v1362
        %v1401 = vpop.f32.mrb[0].mxu0
        %v1402 = vadd.f32 %v914, %v1401
        %v1403 = vpop.f32.mrb[0].mxu0
        %v1404 = vpop.f32.mrb[0].mxu0
        %v1405 = vadd.f32 %v915, %v1404
        %v1406 = vpop.f32.mrb[0].mxu0
        %1407 = vdwg.mxu0
        %v1408 = vsel %vm1165, %v1402, -inf
        %1409 = vmax.xlane.f32.xlu0 %v1408
        %v1410 = vpop.xlane.xlu0 %1409
        %v1411 = vsel %vm1165, %v1405, -inf
        %1412 = vmax.xlane.f32.xlu0 %v1411
        %v1413 = vpop.xlane.xlu0 %1412
        %v1414 = vsub.f32 %v1402, %v1410
        %v1415 = vsub.f32 %v1405, %v1413
        %v1416 = vmul.f32 %v1414, 1.442695
        %v1417 = vpow.pop %v1416
        %v1418 = vmul.f32 %v1415, 1.442695
        %v1419 = vpow.pop %v1418
        %v1420 = vsel %vm1165, %v1417, 0.0
        %1421 = vadd.xlane.f32.xlu0 %v1420
        %v1422 = vpop.xlane.xlu0 %1421
        %v1423 = vsel %vm1165, %v1419, 0.0
        %1424 = vadd.xlane.f32.xlu0 %v1423
        %v1425 = vpop.xlane.xlu0 %1424
        %v1426 = vrcp.pop %v1422
        %v1427 = vmul.f32 %v1417, %v1426
        %v1428 = vrcp.pop %v1425
        %v1429 = vmul.f32 %v1419, %v1428
        %v1430 = vpack.c.bf16 %v1429, %v1427
        %1431 = vrot.lane.b32.xlu0 %v1116, 112
        %v1432 = vpop.permute.xlu0 %1431
        %v1435 = vsel %vm1165, %v1430, 0
        %1437 = vmatprep.subr.bf16.mxu0 0
        %1438 = vmatpush1.bf16.msra.mxu0 %v1432
        %1439 = vmatprep.subr.bf16.mxu0 0
        %1440 = vmatpush1.bf16.msra.mxu0 0
        %1441 = vmatprep.subr.bf16.mxu0 0
        %1442 = vmatpush1.bf16.msra.mxu0 0
        %1443 = vmatprep.subr.bf16.mxu0 0
        %1444 = vmatpush1.bf16.msra.mxu0 0
        %1445 = vmatprep.subr.bf16.mxu0 0
        %1446 = vmatpush1.bf16.msra.mxu0 0
        %1447 = vmatprep.subr.bf16.mxu0 0
        %1448 = vmatpush1.bf16.msra.mxu0 0
        %1449 = vmatprep.subr.bf16.mxu0 0
        %1450 = vmatpush1.bf16.msra.mxu0 0
        %1451 = vmatprep.subr.bf16.mxu0 0
        %1452 = vmatpush1.bf16.msra.mxu0 0
        %1453 = vmatprep.subr.bf16.mxu0 0
        %1454 = vmatpush1.bf16.msra.mxu0 0
        %1455 = vmatprep.subr.bf16.mxu0 0
        %1456 = vmatpush1.bf16.msra.mxu0 0
        %1457 = vmatprep.subr.bf16.mxu0 0
        %1458 = vmatpush1.bf16.msra.mxu0 0
        %1459 = vmatprep.subr.bf16.mxu0 0
        %1460 = vmatpush1.bf16.msra.mxu0 0
        %1461 = vmatprep.subr.bf16.mxu0 0
        %1462 = vmatpush1.bf16.msra.mxu0 0
        %1463 = vmatprep.subr.bf16.mxu0 0
        %1464 = vmatpush1.bf16.msra.mxu0 0
        %1465 = vmatprep.subr.bf16.mxu0 0
        %1466 = vmatpush1.bf16.msra.mxu0 0
        %1467 = vmatprep.subr.bf16.mxu0 0
        %1468 = vmatpush1.bf16.msra.mxu0 0
        %1469 = vmatprep.mubr.bf16.mxu0 0
        %1470 = vmatmul.mubr.bf16.gmra.mrb[0].mxu0 %v1435
        %v1471 = vpop.f32.mrb[0].mxu0
        %v1472 = vadd.f32 0.0, %v1471
        %v1473 = vpop.f32.mrb[0].mxu0
        %v1474 = vpop.f32.mrb[0].mxu0
        %v1475 = vadd.f32 0.0, %v1474
        %v1476 = vpop.f32.mrb[0].mxu0
        %1477 = vdwg.mxu0
        %1478 = vrot.lane.b32.xlu0 %v1114, 104
        %v1479 = vpop.permute.xlu0 %1478
        %1480 = vrot.lane.b32.xlu0 %v1115, 104
        %v1481 = vpop.permute.xlu0 %1480
        %v1483 = vsel %vm1117, %v1479, 0
        %v1486 = vsel %vm1117, %v1481, 0
        %1488 = vmatprep.subr.bf16.mxu0 0
        %1489 = vmatpush1.bf16.xpose.msra.mxu0 %v1486
        %1490 = vmatprep.subr.bf16.mxu0 0
        %1491 = vmatpush1.bf16.xpose.msra.mxu0 0
        %1492 = vmatprep.subr.bf16.mxu0 0
        %1493 = vmatpush1.bf16.xpose.msra.mxu0 0
        %1494 = vmatprep.subr.bf16.mxu0 0
        %1495 = vmatpush1.bf16.xpose.msra.mxu0 0
        %1496 = vmatprep.subr.bf16.mxu0 0
        %1497 = vmatpush1.bf16.xpose.msra.mxu0 0
        %1498 = vmatprep.subr.bf16.mxu0 0
        %1499 = vmatpush1.bf16.xpose.msra.mxu0 0
        %1500 = vmatprep.subr.bf16.mxu0 0
        %1501 = vmatpush1.bf16.xpose.msra.mxu0 0
        %1502 = vmatprep.subr.bf16.mxu0 0
        %1503 = vmatpush1.bf16.xpose.msra.mxu0 0
        %1504 = vmatprep.subr.bf16.mxu0 0
        %1505 = vmatpush1.bf16.xpose.msra.mxu0 0
        %1506 = vmatprep.subr.bf16.mxu0 0
        %1507 = vmatpush1.bf16.xpose.msra.mxu0 0
        %1508 = vmatprep.subr.bf16.mxu0 0
        %1509 = vmatpush1.bf16.xpose.msra.mxu0 0
        %1510 = vmatprep.subr.bf16.mxu0 0
        %1511 = vmatpush1.bf16.xpose.msra.mxu0 0
        %1512 = vmatprep.subr.bf16.mxu0 0
        %1513 = vmatpush1.bf16.xpose.msra.mxu0 0
        %1514 = vmatprep.subr.bf16.mxu0 0
        %1515 = vmatpush1.bf16.xpose.msra.mxu0 0
        %1516 = vmatprep.subr.bf16.mxu0 0
        %1517 = vmatpush1.bf16.xpose.msra.mxu0 0
        %1518 = vmatprep.subr.bf16.mxu0 0
        %1519 = vmatpush1.bf16.xpose.msra.mxu0 0
        %1520 = vmatprep.mubr.bf16.mxu0 0
        %1521 = vmatmul.mubr.bf16.gmra.mrb[0].mxu0 %v1483
        %v1522 = vpop.f32.mrb[0].mxu0
        %v1523 = vadd.f32 %v914, %v1522
        %v1524 = vpop.f32.mrb[0].mxu0
        %v1525 = vpop.f32.mrb[0].mxu0
        %v1526 = vadd.f32 %v915, %v1525
        %v1527 = vpop.f32.mrb[0].mxu0
        %1528 = vdwg.mxu0
        %v1529 = vsel %vm1165, %v1523, -inf
        %1530 = vmax.xlane.f32.xlu0 %v1529
        %v1531 = vpop.xlane.xlu0 %1530
        %v1532 = vsel %vm1165, %v1526, -inf
        %1533 = vmax.xlane.f32.xlu0 %v1532
        %v1534 = vpop.xlane.xlu0 %1533
        %v1535 = vsub.f32 %v1523, %v1531
        %v1536 = vsub.f32 %v1526, %v1534
        %v1537 = vmul.f32 %v1535, 1.442695
        %v1538 = vpow.pop %v1537
        %v1539 = vmul.f32 %v1536, 1.442695
        %v1540 = vpow.pop %v1539
        %v1541 = vsel %vm1165, %v1538, 0.0
        %1542 = vadd.xlane.f32.xlu0 %v1541
        %v1543 = vpop.xlane.xlu0 %1542
        %v1544 = vsel %vm1165, %v1540, 0.0
        %1545 = vadd.xlane.f32.xlu0 %v1544
        %v1546 = vpop.xlane.xlu0 %1545
        %v1547 = vrcp.pop %v1543
        %v1548 = vmul.f32 %v1538, %v1547
        %v1549 = vrcp.pop %v1546
        %v1550 = vmul.f32 %v1540, %v1549
        %v1551 = vpack.c.bf16 %v1550, %v1548
        %1552 = vrot.lane.b32.xlu0 %v1116, 104
        %v1553 = vpop.permute.xlu0 %1552
        %v1556 = vsel %vm1165, %v1551, 0
        %1558 = vmatprep.subr.bf16.mxu0 0
        %1559 = vmatpush1.bf16.msra.mxu0 %v1553
        %1560 = vmatprep.subr.bf16.mxu0 0
        %1561 = vmatpush1.bf16.msra.mxu0 0
        %1562 = vmatprep.subr.bf16.mxu0 0
        %1563 = vmatpush1.bf16.msra.mxu0 0
        %1564 = vmatprep.subr.bf16.mxu0 0
        %1565 = vmatpush1.bf16.msra.mxu0 0
        %1566 = vmatprep.subr.bf16.mxu0 0
        %1567 = vmatpush1.bf16.msra.mxu0 0
        %1568 = vmatprep.subr.bf16.mxu0 0
        %1569 = vmatpush1.bf16.msra.mxu0 0
        %1570 = vmatprep.subr.bf16.mxu0 0
        %1571 = vmatpush1.bf16.msra.mxu0 0
        %1572 = vmatprep.subr.bf16.mxu0 0
        %1573 = vmatpush1.bf16.msra.mxu0 0
        %1574 = vmatprep.subr.bf16.mxu0 0
        %1575 = vmatpush1.bf16.msra.mxu0 0
        %1576 = vmatprep.subr.bf16.mxu0 0
        %1577 = vmatpush1.bf16.msra.mxu0 0
        %1578 = vmatprep.subr.bf16.mxu0 0
        %1579 = vmatpush1.bf16.msra.mxu0 0
        %1580 = vmatprep.subr.bf16.mxu0 0
        %1581 = vmatpush1.bf16.msra.mxu0 0
        %1582 = vmatprep.subr.bf16.mxu0 0
        %1583 = vmatpush1.bf16.msra.mxu0 0
        %1584 = vmatprep.subr.bf16.mxu0 0
        %1585 = vmatpush1.bf16.msra.mxu0 0
        %1586 = vmatprep.subr.bf16.mxu0 0
        %1587 = vmatpush1.bf16.msra.mxu0 0
        %1588 = vmatprep.subr.bf16.mxu0 0
        %1589 = vmatpush1.bf16.msra.mxu0 0
        %1590 = vmatprep.mubr.bf16.mxu0 0
        %1591 = vmatmul.mubr.bf16.gmra.mrb[0].mxu0 %v1556
        %v1592 = vpop.f32.mrb[0].mxu0
        %v1593 = vadd.f32 0.0, %v1592
        %v1594 = vpop.f32.mrb[0].mxu0
        %v1595 = vpop.f32.mrb[0].mxu0
        %v1596 = vadd.f32 0.0, %v1595
        %v1597 = vpop.f32.mrb[0].mxu0
        %1598 = vdwg.mxu0
        %1601 = vrot.lane.b32.xlu0 %v1351, 8
        %v1602 = vpop.permute.xlu0 %1601
        %1603 = vrot.lane.b32.xlu0 %v1354, 8
        %v1604 = vpop.permute.xlu0 %1603
        %1609 = vrot.lane.b32.xlu0 %v1472, 16
        %v1610 = vpop.permute.xlu0 %1609
        %1611 = vrot.lane.b32.xlu0 %v1475, 16
        %v1612 = vpop.permute.xlu0 %1611
        %1617 = vrot.lane.b32.xlu0 %v1593, 24
        %v1618 = vpop.permute.xlu0 %1617
        %1619 = vrot.lane.b32.xlu0 %v1596, 24
        %v1620 = vpop.permute.xlu0 %1619
        %v1623 = vsel %vm1117, %v1227, %v1602
        %v1624 = vsel %vm1117, %v1230, %v1604
        %v1625 = vsel %vm1165, %v1623, %v1610
        %v1626 = vsel %vm1165, %v1624, %v1612
        %vm1627 = vcmask 195584
        %v1628 = vsel %vm1627, %v1625, %v1618
        %v1629 = vsel %vm1627, %v1626, %v1620
        %v1630 = vpack.c.bf16 %v1629, %v1628
        %v1631 = vld [vmem:[%s824] sm:$0xf]
        %v1632 = vld [vmem:[%s824 + $0x4] sm:$0xf]
        %v1633 = vld [vmem:[%s824 + $0x8] sm:$0xf]
        %v1634 = vld [vmem:[%s824 + $0xc] sm:$0xf]
        %v1635 = vld [vmem:[%s827] sm:$0x1]
        %v1637 = vlaneseq
        %v1638 = vshrl.u32 %v1637, 7
        %v1639 = vsub.s32 0, %v1638
        %v1640 = vrot.slane %v1635, %v1639
        %v1646 = vunpack.c.l.b16 %v1631
        %v1647 = vunpack.c.l.b16 %v1632
        %v1648 = vunpack.c.l.b16 %v1633
        %v1649 = vunpack.c.l.b16 %v1634
        %v1650 = vpack.c.b16 %v1647, %v1646
        %v1651 = vpack.c.b16 %v1649, %v1648
        %v1655 = vsel %vm939, %v1630, 0
        %1657 = vmatprep.subr.bf16.mxu0 0
        %1658 = vmatpush1.bf16.msra.mxu0 %v1650
        %1659 = vmatprep.subr.bf16.mxu0 0
        %1660 = vmatpush1.bf16.msra.mxu0 %v1651
        %1661 = vmatprep.subr.bf16.mxu0 0
        %1662 = vmatpush1.bf16.msra.mxu0 0
        %1663 = vmatprep.subr.bf16.mxu0 0
        %1664 = vmatpush1.bf16.msra.mxu0 0
        %1665 = vmatprep.subr.bf16.mxu0 0
        %1666 = vmatpush1.bf16.msra.mxu0 0
        %1667 = vmatprep.subr.bf16.mxu0 0
        %1668 = vmatpush1.bf16.msra.mxu0 0
        %1669 = vmatprep.subr.bf16.mxu0 0
        %1670 = vmatpush1.bf16.msra.mxu0 0
        %1671 = vmatprep.subr.bf16.mxu0 0
        %1672 = vmatpush1.bf16.msra.mxu0 0
        %1673 = vmatprep.subr.bf16.mxu0 0
        %1674 = vmatpush1.bf16.msra.mxu0 0
        %1675 = vmatprep.subr.bf16.mxu0 0
        %1676 = vmatpush1.bf16.msra.mxu0 0
        %1677 = vmatprep.subr.bf16.mxu0 0
        %1678 = vmatpush1.bf16.msra.mxu0 0
        %1679 = vmatprep.subr.bf16.mxu0 0
        %1680 = vmatpush1.bf16.msra.mxu0 0
        %1681 = vmatprep.subr.bf16.mxu0 0
        %1682 = vmatpush1.bf16.msra.mxu0 0
        %1683 = vmatprep.subr.bf16.mxu0 0
        %1684 = vmatpush1.bf16.msra.mxu0 0
        %1685 = vmatprep.subr.bf16.mxu0 0
        %1686 = vmatpush1.bf16.msra.mxu0 0
        %1687 = vmatprep.subr.bf16.mxu0 0
        %1688 = vmatpush1.bf16.msra.mxu0 0
        %1689 = vmatprep.mubr.bf16.mxu0 0
        %1690 = vmatmul.mubr.bf16.gmra.mrb[0].mxu0 %v1655
        %v1691 = vpop.f32.mrb[0].mxu0
        %v1692 = vadd.f32 %v1640, %v1691
        %v1693 = vpop.f32.mrb[0].mxu0
        %v1694 = vpop.f32.mrb[0].mxu0
        %v1695 = vadd.f32 %v1640, %v1694
        %v1696 = vpop.f32.mrb[0].mxu0
        %1697 = vdwg.mxu0
        %v1698 = vadd.f32 %v1692, %v911
        %v1699 = vadd.f32 %v1695, %v912
        %v1700 = vld [vmem:[%s830] sm:$0x1]
        %v1701 = vld [vmem:[%s833] sm:$0x1]
        %v1702 = vsel %vm939, %v1698, 0.0
        %1703 = vadd.xlane.f32.xlu0 %v1702
        %v1704 = vpop.xlane.xlu0 %1703
        %v1705 = vsel %vm939, %v1699, 0.0
        %1706 = vadd.xlane.f32.xlu0 %v1705
        %v1707 = vpop.xlane.xlu0 %1706
        %v1708 = vrcp.pop 32.0
        %v1709 = vmul.f32 %v1704, %v1708
        %v1710 = vmul.f32 %v1707, %v1708
        %v1711 = vsub.f32 %v1698, %v1709
        %v1712 = vsub.f32 %v1699, %v1710
        %v1713 = vmul.f32 %v1711, %v1711
        %v1714 = vmul.f32 %v1712, %v1712
        %v1715 = vsel %vm939, %v1713, 0.0
        %1716 = vadd.xlane.f32.xlu0 %v1715
        %v1717 = vpop.xlane.xlu0 %1716
        %v1718 = vsel %vm939, %v1714, 0.0
        %1719 = vadd.xlane.f32.xlu0 %v1718
        %v1720 = vpop.xlane.xlu0 %1719
        %v1721 = vmul.f32 %v1717, %v1708
        %v1722 = vmul.f32 %v1720, %v1708
        %v1723 = vadd.f32 %v1721, 1e-12
        %v1724 = vadd.f32 %v1722, 1e-12
        %v1725 = vrsqrt.pop %v1723
        %v1726 = vrsqrt.pop %v1724
        %v1727 = vmul.f32 %v1711, %v1725
        %v1728 = vmul.f32 %v1712, %v1726
        %v1730 = vlaneseq
        %v1731 = vshrl.u32 %v1730, 7
        %v1732 = vsub.s32 0, %v1731
        %v1733 = vrot.slane %v1700, %v1732
        %v1735 = vmul.f32 %v1727, %v1733
        %v1736 = vmul.f32 %v1728, %v1733
        %v1738 = vlaneseq
        %v1739 = vshrl.u32 %v1738, 7
        %v1740 = vsub.s32 0, %v1739
        %v1741 = vrot.slane %v1701, %v1740
        %v1743 = vadd.f32 %v1735, %v1741
        %v1744 = vadd.f32 %v1736, %v1741
        %v1745 = vpack.c.bf16 %v1744, %v1743
        %v1746 = vld [vmem:[%s838] sm:$0xf]
        %v1747 = vld [vmem:[%s838 + $0x4] sm:$0xf]
        %v1748 = vld [vmem:[%s838 + $0x8] sm:$0xf]
        %v1749 = vld [vmem:[%s838 + $0xc] sm:$0xf]
        %v1750 = vld [vmem:[%s841] sm:$0x1]
        %v1752 = vlaneseq
        %v1753 = vshrl.u32 %v1752, 7
        %v1754 = vsub.s32 0, %v1753
        %v1755 = vrot.slane %v1750, %v1754
        %v1761 = vunpack.c.l.b16 %v1746
        %v1762 = vunpack.c.l.b16 %v1747
        %v1763 = vunpack.c.l.b16 %v1748
        %v1764 = vunpack.c.l.b16 %v1749
        %v1765 = vpack.c.b16 %v1762, %v1761
        %v1766 = vpack.c.b16 %v1764, %v1763
        %v1770 = vsel %vm939, %v1745, 0
        %1772 = vmatprep.subr.bf16.mxu0 0
        %1773 = vmatpush1.bf16.msra.mxu0 %v1765
        %1774 = vmatprep.subr.bf16.mxu0 0
        %1775 = vmatpush1.bf16.msra.mxu0 %v1766
        %1776 = vmatprep.subr.bf16.mxu0 0
        %1777 = vmatpush1.bf16.msra.mxu0 0
        %1778 = vmatprep.subr.bf16.mxu0 0
        %1779 = vmatpush1.bf16.msra.mxu0 0
        %1780 = vmatprep.subr.bf16.mxu0 0
        %1781 = vmatpush1.bf16.msra.mxu0 0
        %1782 = vmatprep.subr.bf16.mxu0 0
        %1783 = vmatpush1.bf16.msra.mxu0 0
        %1784 = vmatprep.subr.bf16.mxu0 0
        %1785 = vmatpush1.bf16.msra.mxu0 0
        %1786 = vmatprep.subr.bf16.mxu0 0
        %1787 = vmatpush1.bf16.msra.mxu0 0
        %1788 = vmatprep.subr.bf16.mxu0 0
        %1789 = vmatpush1.bf16.msra.mxu0 0
        %1790 = vmatprep.subr.bf16.mxu0 0
        %1791 = vmatpush1.bf16.msra.mxu0 0
        %1792 = vmatprep.subr.bf16.mxu0 0
        %1793 = vmatpush1.bf16.msra.mxu0 0
        %1794 = vmatprep.subr.bf16.mxu0 0
        %1795 = vmatpush1.bf16.msra.mxu0 0
        %1796 = vmatprep.subr.bf16.mxu0 0
        %1797 = vmatpush1.bf16.msra.mxu0 0
        %1798 = vmatprep.subr.bf16.mxu0 0
        %1799 = vmatpush1.bf16.msra.mxu0 0
        %1800 = vmatprep.subr.bf16.mxu0 0
        %1801 = vmatpush1.bf16.msra.mxu0 0
        %1802 = vmatprep.subr.bf16.mxu0 0
        %1803 = vmatpush1.bf16.msra.mxu0 0
        %1804 = vmatprep.mubr.bf16.mxu0 0
        %1805 = vmatmul.mubr.bf16.gmra.mrb[0].mxu0 %v1770
        %v1806 = vpop.f32.mrb[0].mxu0
        %v1807 = vadd.f32 %v1755, %v1806
        %v1808 = vpop.f32.mrb[0].mxu0
        %v1809 = vpop.f32.mrb[0].mxu0
        %v1810 = vadd.f32 %v1755, %v1809
        %v1811 = vpop.f32.mrb[0].mxu0
        %1812 = vdwg.mxu0
        %v1813 = vmul.f32 %v1807, %v1807
        %v1814 = vmul.f32 %v1810, %v1810
        %v1815 = vmul.f32 %v1807, %v1813
        %v1816 = vmul.f32 %v1810, %v1814
        %v1817 = vmul.f32 %v1815, 0.044715
        %v1818 = vmul.f32 %v1816, 0.044715
        %v1819 = vadd.f32 %v1807, %v1817
        %v1820 = vadd.f32 %v1810, %v1818
        %v1821 = vmul.f32 %v1819, 0.7978846
        %v1822 = vmul.f32 %v1820, 0.7978846
        %v1823 = vtanh.pop %v1821
        %v1824 = vtanh.pop %v1822
        %v1825 = vadd.f32 %v1823, 1.0
        %v1826 = vadd.f32 %v1824, 1.0
        %v1827 = vmul.f32 %v1825, 0.5
        %v1828 = vmul.f32 %v1826, 0.5
        %v1829 = vmul.f32 %v1807, %v1827
        %v1830 = vmul.f32 %v1810, %v1828
        %v1831 = vpack.c.bf16 %v1830, %v1829
        %v1832 = vld [vmem:[%s846] sm:$0xf]
        %v1833 = vld [vmem:[%s846 + $0x4] sm:$0xf]
        %v1834 = vld [vmem:[%s846 + $0x8] sm:$0xf]
        %v1835 = vld [vmem:[%s846 + $0xc] sm:$0xf]
        %v1836 = vld [vmem:[%s846 + $0x10] sm:$0xf]
        %v1837 = vld [vmem:[%s846 + $0x14] sm:$0xf]
        %v1838 = vld [vmem:[%s846 + $0x18] sm:$0xf]
        %v1839 = vld [vmem:[%s846 + $0x1c] sm:$0xf]
        %v1840 = vld [vmem:[%s849] sm:$0x1]
        %v1842 = vlaneseq
        %v1843 = vshrl.u32 %v1842, 7
        %v1844 = vsub.s32 0, %v1843
        %v1845 = vrot.slane %v1840, %v1844
        %v1855 = vunpack.c.l.b16 %v1832
        %v1856 = vunpack.c.l.b16 %v1833
        %v1857 = vunpack.c.l.b16 %v1834
        %v1858 = vunpack.c.l.b16 %v1835
        %v1859 = vunpack.c.l.b16 %v1836
        %v1860 = vunpack.c.l.b16 %v1837
        %v1861 = vunpack.c.l.b16 %v1838
        %v1862 = vunpack.c.l.b16 %v1839
        %v1863 = vpack.c.b16 %v1856, %v1855
        %v1864 = vpack.c.b16 %v1858, %v1857
        %v1865 = vpack.c.b16 %v1860, %v1859
        %v1866 = vpack.c.b16 %v1862, %v1861
        %vm1871 = vcmask 523264
        %v1873 = vsel %vm1871, %v1831, 0
        %1875 = vmatprep.subr.bf16.mxu0 0
        %1876 = vmatpush1.bf16.msra.mxu0 %v1863
        %1877 = vmatprep.subr.bf16.mxu0 0
        %1878 = vmatpush1.bf16.msra.mxu0 %v1864
        %1879 = vmatprep.subr.bf16.mxu0 0
        %1880 = vmatpush1.bf16.msra.mxu0 %v1865
        %1881 = vmatprep.subr.bf16.mxu0 0
        %1882 = vmatpush1.bf16.msra.mxu0 %v1866
        %1883 = vmatprep.subr.bf16.mxu0 0
        %1884 = vmatpush1.bf16.msra.mxu0 0
        %1885 = vmatprep.subr.bf16.mxu0 0
        %1886 = vmatpush1.bf16.msra.mxu0 0
        %1887 = vmatprep.subr.bf16.mxu0 0
        %1888 = vmatpush1.bf16.msra.mxu0 0
        %1889 = vmatprep.subr.bf16.mxu0 0
        %1890 = vmatpush1.bf16.msra.mxu0 0
        %1891 = vmatprep.subr.bf16.mxu0 0
        %1892 = vmatpush1.bf16.msra.mxu0 0
        %1893 = vmatprep.subr.bf16.mxu0 0
        %1894 = vmatpush1.bf16.msra.mxu0 0
        %1895 = vmatprep.subr.bf16.mxu0 0
        %1896 = vmatpush1.bf16.msra.mxu0 0
        %1897 = vmatprep.subr.bf16.mxu0 0
        %1898 = vmatpush1.bf16.msra.mxu0 0
        %1899 = vmatprep.subr.bf16.mxu0 0
        %1900 = vmatpush1.bf16.msra.mxu0 0
        %1901 = vmatprep.subr.bf16.mxu0 0
        %1902 = vmatpush1.bf16.msra.mxu0 0
        %1903 = vmatprep.subr.bf16.mxu0 0
        %1904 = vmatpush1.bf16.msra.mxu0 0
        %1905 = vmatprep.subr.bf16.mxu0 0
        %1906 = vmatpush1.bf16.msra.mxu0 0
        %1907 = vmatprep.mubr.bf16.mxu0 0
        %1908 = vmatmul.mubr.bf16.gmra.mrb[0].mxu0 %v1873
        %v1909 = vpop.f32.mrb[0].mxu0
        %v1910 = vadd.f32 %v1845, %v1909
        %v1911 = vpop.f32.mrb[0].mxu0
        %v1912 = vpop.f32.mrb[0].mxu0
        %v1913 = vadd.f32 %v1845, %v1912
        %v1914 = vpop.f32.mrb[0].mxu0
        %1915 = vdwg.mxu0
        %v1916 = vadd.f32 %v1910, %v1743
        %v1917 = vadd.f32 %v1913, %v1744
        %v1918 = vld [vmem:[%s852] sm:$0x1]
        %v1919 = vld [vmem:[%s855] sm:$0x1]
        %v1920 = vsel %vm939, %v1916, 0.0
        %1921 = vadd.xlane.f32.xlu0 %v1920
        %v1922 = vpop.xlane.xlu0 %1921
        %v1923 = vsel %vm939, %v1917, 0.0
        %1924 = vadd.xlane.f32.xlu0 %v1923
        %v1925 = vpop.xlane.xlu0 %1924
        %v1926 = vmul.f32 %v1922, %v1708
        %v1927 = vmul.f32 %v1925, %v1708
        %v1928 = vsub.f32 %v1916, %v1926
        %v1929 = vsub.f32 %v1917, %v1927
        %v1930 = vmul.f32 %v1928, %v1928
        %v1931 = vmul.f32 %v1929, %v1929
        %v1932 = vsel %vm939, %v1930, 0.0
        %1933 = vadd.xlane.f32.xlu0 %v1932
        %v1934 = vpop.xlane.xlu0 %1933
        %v1935 = vsel %vm939, %v1931, 0.0
        %1936 = vadd.xlane.f32.xlu0 %v1935
        %v1937 = vpop.xlane.xlu0 %1936
        %v1938 = vmul.f32 %v1934, %v1708
        %v1939 = vmul.f32 %v1937, %v1708
        %v1940 = vadd.f32 %v1938, 1e-12
        %v1941 = vadd.f32 %v1939, 1e-12
        %v1942 = vrsqrt.pop %v1940
        %v1943 = vrsqrt.pop %v1941
        %v1944 = vmul.f32 %v1928, %v1942
        %v1945 = vmul.f32 %v1929, %v1943
        %v1947 = vlaneseq
        %v1948 = vshrl.u32 %v1947, 7
        %v1949 = vsub.s32 0, %v1948
        %v1950 = vrot.slane %v1918, %v1949
        %v1952 = vmul.f32 %v1944, %v1950
        %v1953 = vmul.f32 %v1945, %v1950
        %v1955 = vlaneseq
        %v1956 = vshrl.u32 %v1955, 7
        %v1957 = vsub.s32 0, %v1956
        %v1958 = vrot.slane %v1919, %v1957
        %v1960 = vadd.f32 %v1952, %v1958
        %v1961 = vadd.f32 %v1953, %v1958
        %1962 = vst.msk [vmem:[#allocation2] sm:$0xff] %vm939, %v1960
        %1963 = vst.msk [vmem:[#allocation2 + $0x8] sm:$0xff] %vm939, %v1961
        %p1964 = scmp.eq.s32.totalorder %s32, 1
        // Predicated region
        $region105: #{bert_forward.1} parent=99 // pred_check
          %p1965 = pneg %p1964
        $region106: #{bert_forward.1} parent=99 // pred_check_branch
          %1967 = sbr.rel (%p1965) target = $region108
        $region107: #{bert_forward.1} parent=99 // pred_region
          %1968 = vst.msk [vmem:[#allocation3] sm:$0xff] %vm939, %v1960
          %1969 = vst.msk [vmem:[#allocation3 + $0x8] sm:$0xff] %vm939, %v1961
        $region108: #{bert_forward.1} parent=99 // pred_fallthru
          _
        // Predicated region
        $region109: #{bert_forward.1} parent=99 // pred_check
          %p1970 = pneg %p545
        $region110: #{bert_forward.1} parent=99 // pred_check_branch
          %1972 = sbr.rel (%p1970) target = $region112
        $region111: #{bert_forward.1} parent=99 // pred_region
          %s1974 = ssub.s32 256, 256
          %1975 = vsyncadd [#allocation4], %s1974
          %s1976 = sshll.u32 [#allocation3], 4
          %s1977 = int_to_ptr.vmem [resolvable:$true] %s1976
          %1982 = dma.vmem_to_hbm [thread:$0]  %s1977, 256, %s20, [#allocation4], 128, 128, 8
        $region112: #{bert_forward.1} parent=99 // pred_fallthru
          _
        // Predicated region
        $region113: #{bert_forward.1} parent=99 // pred_check
          %p1983 = pneg %p545
        $region114: #{bert_forward.1} parent=99 // pred_check_branch
          %1985 = sbr.rel (%p1983) target = $region116
        $region115: #{bert_forward.1} parent=99 // pred_region
          %1986 = dma.done [#allocation4], 256
        $region116: #{bert_forward.1} parent=99 // pred_fallthru
          _
      $region100: #{bert_forward.1} parent=5 // pred_fallthru
        _
      %p1987 = scmp.le.s32.totalorder 2, %s27
      // Predicated region
      $region117: #{bert_forward.1} parent=5 // pred_check
        %p1988 = pneg %p1987
      $region118: #{bert_forward.1} parent=5 // pred_check_branch
        %1990 = sbr.rel (%p1988) target = $region120
      $region119: #{bert_forward.1} parent=5 // pred_region
        %s1991 = ssub.s32 %s27, 2
      $region120: #{bert_forward.1} parent=5 // pred_fallthru
        _
    $region6: #{bert_forward.1} parent=1 // loop_footer
      %s31 = sadd.s32 1, %s27
    $region7: #{bert_forward.1} parent=1 // loop_footer_branch
      %26 = sbr.rel target = $region3
    $region8: #{bert_forward.1} parent=1 // loop_exit
      _
    %1992 = vsyncpa [#allocation4], 1
    %s1993 = scalar_lea.sflag [#allocation4], 1
    %1994 = vsyncpa %s1993, 1

</llo_original>
